<compile_context>
chip_gen: v6e
topology: v6e:2x2x1
jax: 0.10.0
libtpu: 0.0.40
codegen_flags: <defaults>
</compile_context>

<pallas_src>
import functools

import jax
import jax.numpy as jnp
from jax.experimental import pallas as pl
from jax.experimental.pallas import tpu as pltpu


# ---------------------------------------------------------------------------
# Kernel: one batch-tile of the full MLP forward pass.
# ---------------------------------------------------------------------------
def dnn_kernel(x_ref,
               w1_ref, b1_ref,
               w2_ref, b2_ref,
               w3_ref, b3_ref,
               w4_ref, b4_ref,
               w5_ref, b5_ref,
               out_ref):
    """Hidden layer i: h = relu(h @ Wi' + bi')   (BN folded into Wi', bi')
       Final layer   : out = bf16(h @ W5 + b5)   (output padded to 128 lanes)
    """
    h = x_ref[...]  # bf16 (batch_tile, D)

    def hidden(h, w_ref, b_ref):
        # bf16 x bf16 matmul on the MXU, accumulate in f32.
        z = jnp.dot(h, w_ref[...], preferred_element_type=jnp.float32)
        # Bias + ReLU in f32 (safe on v5e's f32-only VPU), back to bf16 for
        # the next MXU pass.
        z = jnp.maximum(z + b_ref[...], 0.0)
        return z.astype(jnp.bfloat16)

    h = hidden(h, w1_ref, b1_ref)
    h = hidden(h, w2_ref, b2_ref)
    h = hidden(h, w3_ref, b3_ref)
    h = hidden(h, w4_ref, b4_ref)

    z = jnp.dot(h, w5_ref[...], preferred_element_type=jnp.float32)
    out_ref[...] = (z + b5_ref[...]).astype(out_ref.dtype)


# ---------------------------------------------------------------------------
# Parameter construction / one-time packing (runs outside the jitted forward).
# ---------------------------------------------------------------------------
def make_params(key, input_dim, num_classes):
    """Deterministic synthetic parameters mirroring DNNClassifier.__init__."""
    dims = [input_dim, 256, 128, 64, 32, num_classes]
    params = {}
    for i in range(5):
        fan_in, fan_out = dims[i], dims[i + 1]
        key, kw, kb = jax.random.split(key, 3)
        bound = 1.0 / jnp.sqrt(fan_in)
        # PyTorch Linear stores weight as (out, in); we keep (in, out) = W.T
        params[f"w{i+1}"] = jax.random.uniform(
            kw, (fan_in, fan_out), jnp.float32, -bound, bound)
        params[f"b{i+1}"] = jax.random.uniform(
            kb, (fan_out,), jnp.float32, -bound, bound)
    # BatchNorm1d affine + running stats for the 4 hidden layers (eval mode).
    eps = 1e-5
    for i, n in enumerate([256, 128, 64, 32], start=1):
        key, kg, kb, km, kv = jax.random.split(key, 5)
        gamma = jax.random.uniform(kg, (n,), jnp.float32, 0.5, 1.5)
        beta = jax.random.uniform(kb, (n,), jnp.float32, -0.5, 0.5)
        r_mean = jax.random.uniform(km, (n,), jnp.float32, -0.5, 0.5)
        r_var = jax.random.uniform(kv, (n,), jnp.float32, 0.5, 1.5)
        scale = gamma / jnp.sqrt(r_var + eps)
        shift = beta - r_mean * scale
        params[f"s{i}"] = scale
        params[f"t{i}"] = shift
    return params


def pack_params(params):
    """Fold BN into Linear, cast weights to bf16, pad final layer to 128 lanes.

    Runs ONCE outside the jitted forward so no fold/cast/pad ops (or their
    HBM traffic) appear on the per-call path.
    """
    packed = []
    for i in range(1, 5):
        w = params[f"w{i}"]
        b = params[f"b{i}"]
        s = params[f"s{i}"]
        t = params[f"t{i}"]
        w_fold = (w * s[None, :]).astype(jnp.bfloat16)     # column scale
        b_fold = (b * s + t).reshape(1, -1)                 # f32 row vector
        packed += [w_fold, b_fold]

    w5 = params["w5"]
    b5 = params["b5"]
    C = w5.shape[1]
    C_pad = max(128, ((C + 127) // 128) * 128)               # lane-dense output
    w5_p = jnp.zeros((w5.shape[0], C_pad), jnp.float32).at[:, :C].set(w5)
    b5_p = jnp.zeros((1, C_pad), jnp.float32).at[:, :C].set(b5)
    packed += [w5_p.astype(jnp.bfloat16), b5_p]
    packed = [jax.device_put(a) for a in packed]
    return tuple(packed), C, C_pad


# ---------------------------------------------------------------------------
# Generation-aware tile selection (v5e/v6e: 1 grid step; v7x: 2 parallel steps)
# ---------------------------------------------------------------------------
def _num_tensorcores_per_chip():
    try:
        kind = jax.devices()[0].device_kind.lower()
    except Exception:
        return 1
    # Dual-TensorCore chips: v7x, and megacore v4/v5p. Single TC otherwise.
    if any(tag in kind for tag in ("v7", "v4", "v5p")):
        return 2
    return 1


def _pick_batch_tile(batch, num_tc):
    # 16-row granule (bf16 sublane packing) per core; split evenly across TCs.
    granule = 16 * num_tc
    b_pad = ((batch + granule - 1) // granule) * granule
    return b_pad // num_tc


# ---------------------------------------------------------------------------
# Jitted forward: takes pre-packed params, returns PADDED bf16 logits.
# ---------------------------------------------------------------------------
@functools.partial(jax.jit, static_argnames=("batch_tile",))
def dnn_forward(x, packed, batch_tile):
    B, D = x.shape
    C_pad = packed[-1].shape[-1]

    # Pad the batch to a multiple of the tile so every grid step is full.
    B_pad = ((B + batch_tile - 1) // batch_tile) * batch_tile
    x_p = x.astype(jnp.bfloat16)
    if B_pad != B:
        x_p = jnp.pad(x_p, ((0, B_pad - B), (0, 0)))

    grid = (B_pad // batch_tile,)

    # x / out tiled over the batch; every parameter is a full resident block.
    x_spec = pl.BlockSpec((batch_tile, D), lambda i: (i, 0))
    param_specs = [pl.BlockSpec(a.shape, lambda i: (0, 0)) for a in packed]
    out_spec = pl.BlockSpec((batch_tile, C_pad), lambda i: (i, 0))

    out = pl.pallas_call(
        dnn_kernel,
        out_shape=jax.ShapeDtypeStruct((B_pad, C_pad), jnp.bfloat16),
        grid_spec=pltpu.PrefetchScalarGridSpec(
            num_scalar_prefetch=0,
            grid=grid,
            in_specs=[x_spec] + param_specs,
            out_specs=out_spec,
        ),
        compiler_params=pltpu.CompilerParams(
            dimension_semantics=("parallel",),
        ),
    )(x_p, *packed)

    # Padded logits returned on purpose; the consumer slices [:B, :C].
    return out


# ---------------------------------------------------------------------------
# Pure-JAX references.
# ---------------------------------------------------------------------------
def dnn_forward_ref(x, params):
    """f32 eval-mode forward with unfolded BN."""
    h = x
    for i in range(1, 5):
        h = h @ params[f"w{i}"] + params[f"b{i}"]
        h = h * params[f"s{i}"] + params[f"t{i}"]
        h = jnp.maximum(h, 0.0)
    return h @ params["w5"] + params["b5"]


def dnn_forward_ref_bf16(x, params):
    """Same bf16-operand / f32-accumulate recipe as the kernel."""
    h = x.astype(jnp.bfloat16)
    for i in range(1, 5):
        w = (params[f"w{i}"] * params[f"s{i}"][None, :]).astype(jnp.bfloat16)
        b = params[f"b{i}"] * params[f"s{i}"] + params[f"t{i}"]
        z = jnp.dot(h, w, preferred_element_type=jnp.float32) + b
        h = jnp.maximum(z, 0.0).astype(jnp.bfloat16)
    return (jnp.dot(h, params["w5"].astype(jnp.bfloat16),
                    preferred_element_type=jnp.float32) + params["b5"])


# TODO(synk): training-mode Dropout / BatchNorm batch statistics are not
# implemented; this kernel reproduces eval-mode (inference) semantics only.


if __name__ == "__main__":
    input_dim = 32
    num_classes = 10
    batch = 256

    key = jax.random.PRNGKey(0)
    kx, kp = jax.random.split(key)
    x = jax.random.normal(kx, (batch, input_dim), jnp.float32)
    params = make_params(kp, input_dim, num_classes)

    # One-time packing + generation-aware tile choice (outside the jit).
    packed, C, C_pad = pack_params(params)
    num_tc = _num_tensorcores_per_chip()
    batch_tile = _pick_batch_tile(batch, num_tc)

    out_padded = jax.block_until_ready(
        dnn_forward(x, packed, batch_tile=batch_tile))
    assert out_padded.shape[1] == C_pad
    out = jnp.asarray(out_padded[:batch, :C], jnp.float32)
    assert out.shape == (batch, num_classes)

    # Tight check vs. an identically-quantized (bf16 operand) pure-JAX reference.
    ref_bf16 = dnn_forward_ref_bf16(x, params)
    assert jnp.allclose(out, ref_bf16, atol=5e-2, rtol=5e-2), \
        "mismatch vs bf16 reference"

    # Looser check vs. the full-f32 eval-mode reference (bf16 quantization).
    ref_f32 = dnn_forward_ref(x, params)
    assert jnp.allclose(out, ref_f32, atol=1e-1, rtol=1e-1), \
        "mismatch vs f32 reference"

    print("KERNEL_OK")
</pallas_src>

<mosaic_0001>
module attributes {stable_mosaic.version = 11 : i64} {
  func.func @dnn_kernel(%arg0: i32, %arg1: memref<256x32xbf16, #tpu.memory_space<vmem>>, %arg2: memref<32x256xbf16, #tpu.memory_space<vmem>>, %arg3: memref<1x256xf32, #tpu.memory_space<vmem>>, %arg4: memref<256x128xbf16, #tpu.memory_space<vmem>>, %arg5: memref<1x128xf32, #tpu.memory_space<vmem>>, %arg6: memref<128x64xbf16, #tpu.memory_space<vmem>>, %arg7: memref<1x64xf32, #tpu.memory_space<vmem>>, %arg8: memref<64x32xbf16, #tpu.memory_space<vmem>>, %arg9: memref<1x32xf32, #tpu.memory_space<vmem>>, %arg10: memref<32x128xbf16, #tpu.memory_space<vmem>>, %arg11: memref<1x128xf32, #tpu.memory_space<vmem>>, %arg12: memref<256x128xbf16, #tpu.memory_space<vmem>>) attributes {dimension_semantics = [#tpu.dimension_semantics<parallel>], iteration_bounds = array<i64: 1>, scalar_prefetch = 0 : i64, scratch_operands = 0 : i64, tpu.core_type = #tpu.core_type<tc>, window_params = [{transform_indices = @transform_0, window_bounds = array<i64: 256, 32>}, {pipeline_mode = #tpu.pipeline_mode<synchronous>, transform_indices = @transform_1, window_bounds = array<i64: 32, 256>}, {pipeline_mode = #tpu.pipeline_mode<synchronous>, transform_indices = @transform_2, window_bounds = array<i64: 1, 256>}, {pipeline_mode = #tpu.pipeline_mode<synchronous>, transform_indices = @transform_3, window_bounds = array<i64: 256, 128>}, {pipeline_mode = #tpu.pipeline_mode<synchronous>, transform_indices = @transform_4, window_bounds = array<i64: 1, 128>}, {pipeline_mode = #tpu.pipeline_mode<synchronous>, transform_indices = @transform_5, window_bounds = array<i64: 128, 64>}, {pipeline_mode = #tpu.pipeline_mode<synchronous>, transform_indices = @transform_6, window_bounds = array<i64: 1, 64>}, {pipeline_mode = #tpu.pipeline_mode<synchronous>, transform_indices = @transform_7, window_bounds = array<i64: 64, 32>}, {pipeline_mode = #tpu.pipeline_mode<synchronous>, transform_indices = @transform_8, window_bounds = array<i64: 1, 32>}, {pipeline_mode = #tpu.pipeline_mode<synchronous>, transform_indices = @transform_9, window_bounds = array<i64: 32, 128>}, {pipeline_mode = #tpu.pipeline_mode<synchronous>, transform_indices = @transform_10, window_bounds = array<i64: 1, 128>}, {transform_indices = @transform_11, window_bounds = array<i64: 256, 128>}]} {
    %c0 = arith.constant 0 : index
    %c0_0 = arith.constant 0 : index
    %0 = vector.load %arg1[%c0, %c0_0] : memref<256x32xbf16, #tpu.memory_space<vmem>>, vector<256x32xbf16>
    %c0_1 = arith.constant 0 : index
    %c0_2 = arith.constant 0 : index
    %1 = vector.load %arg2[%c0_1, %c0_2] : memref<32x256xbf16, #tpu.memory_space<vmem>>, vector<32x256xbf16>
    %cst = arith.constant dense<0.000000e+00> : vector<256x256xf32>
    %2 = tpu.matmul %0, %1, %cst {dimension_numbers = #tpu.dot_dimension_numbers<[1], [0], [0], [1], [0, 0, 1, 1], [], []>} : vector<256x32xbf16>, vector<32x256xbf16>, vector<256x256xf32> -> vector<256x256xf32>
    %c0_3 = arith.constant 0 : index
    %c0_4 = arith.constant 0 : index
    %3 = vector.load %arg3[%c0_3, %c0_4] : memref<1x256xf32, #tpu.memory_space<vmem>>, vector<1x256xf32>
    %4 = vector.broadcast %3 : vector<1x256xf32> to vector<256x256xf32>
    %5 = arith.addf %2, %4 : vector<256x256xf32>
    %cst_5 = arith.constant 0.000000e+00 : f32
    %6 = vector.broadcast %cst_5 : f32 to vector<256x256xf32>
    %7 = arith.maximumf %5, %6 : vector<256x256xf32>
    %8 = arith.truncf %7 : vector<256x256xf32> to vector<256x256xbf16>
    %c0_6 = arith.constant 0 : index
    %c0_7 = arith.constant 0 : index
    %9 = vector.load %arg4[%c0_6, %c0_7] : memref<256x128xbf16, #tpu.memory_space<vmem>>, vector<256x128xbf16>
    %cst_8 = arith.constant dense<0.000000e+00> : vector<256x128xf32>
    %10 = tpu.matmul %8, %9, %cst_8 {dimension_numbers = #tpu.dot_dimension_numbers<[1], [0], [0], [1], [0, 0, 1, 1], [], []>} : vector<256x256xbf16>, vector<256x128xbf16>, vector<256x128xf32> -> vector<256x128xf32>
    %c0_9 = arith.constant 0 : index
    %c0_10 = arith.constant 0 : index
    %11 = vector.load %arg5[%c0_9, %c0_10] : memref<1x128xf32, #tpu.memory_space<vmem>>, vector<1x128xf32>
    %12 = vector.broadcast %11 : vector<1x128xf32> to vector<256x128xf32>
    %13 = arith.addf %10, %12 : vector<256x128xf32>
    %cst_11 = arith.constant 0.000000e+00 : f32
    %14 = vector.broadcast %cst_11 : f32 to vector<256x128xf32>
    %15 = arith.maximumf %13, %14 : vector<256x128xf32>
    %16 = arith.truncf %15 : vector<256x128xf32> to vector<256x128xbf16>
    %c0_12 = arith.constant 0 : index
    %c0_13 = arith.constant 0 : index
    %17 = vector.load %arg6[%c0_12, %c0_13] : memref<128x64xbf16, #tpu.memory_space<vmem>>, vector<128x64xbf16>
    %cst_14 = arith.constant dense<0.000000e+00> : vector<256x64xf32>
    %18 = tpu.matmul %16, %17, %cst_14 {dimension_numbers = #tpu.dot_dimension_numbers<[1], [0], [0], [1], [0, 0, 1, 1], [], []>} : vector<256x128xbf16>, vector<128x64xbf16>, vector<256x64xf32> -> vector<256x64xf32>
    %c0_15 = arith.constant 0 : index
    %c0_16 = arith.constant 0 : index
    %19 = vector.load %arg7[%c0_15, %c0_16] : memref<1x64xf32, #tpu.memory_space<vmem>>, vector<1x64xf32>
    %20 = vector.broadcast %19 : vector<1x64xf32> to vector<256x64xf32>
    %21 = arith.addf %18, %20 : vector<256x64xf32>
    %cst_17 = arith.constant 0.000000e+00 : f32
    %22 = vector.broadcast %cst_17 : f32 to vector<256x64xf32>
    %23 = arith.maximumf %21, %22 : vector<256x64xf32>
    %24 = arith.truncf %23 : vector<256x64xf32> to vector<256x64xbf16>
    %c0_18 = arith.constant 0 : index
    %c0_19 = arith.constant 0 : index
    %25 = vector.load %arg8[%c0_18, %c0_19] : memref<64x32xbf16, #tpu.memory_space<vmem>>, vector<64x32xbf16>
    %cst_20 = arith.constant dense<0.000000e+00> : vector<256x32xf32>
    %26 = tpu.matmul %24, %25, %cst_20 {dimension_numbers = #tpu.dot_dimension_numbers<[1], [0], [0], [1], [0, 0, 1, 1], [], []>} : vector<256x64xbf16>, vector<64x32xbf16>, vector<256x32xf32> -> vector<256x32xf32>
    %c0_21 = arith.constant 0 : index
    %c0_22 = arith.constant 0 : index
    %27 = vector.load %arg9[%c0_21, %c0_22] : memref<1x32xf32, #tpu.memory_space<vmem>>, vector<1x32xf32>
    %28 = vector.broadcast %27 : vector<1x32xf32> to vector<256x32xf32>
    %29 = arith.addf %26, %28 : vector<256x32xf32>
    %cst_23 = arith.constant 0.000000e+00 : f32
    %30 = vector.broadcast %cst_23 : f32 to vector<256x32xf32>
    %31 = arith.maximumf %29, %30 : vector<256x32xf32>
    %32 = arith.truncf %31 : vector<256x32xf32> to vector<256x32xbf16>
    %c0_24 = arith.constant 0 : index
    %c0_25 = arith.constant 0 : index
    %33 = vector.load %arg10[%c0_24, %c0_25] : memref<32x128xbf16, #tpu.memory_space<vmem>>, vector<32x128xbf16>
    %cst_26 = arith.constant dense<0.000000e+00> : vector<256x128xf32>
    %34 = tpu.matmul %32, %33, %cst_26 {dimension_numbers = #tpu.dot_dimension_numbers<[1], [0], [0], [1], [0, 0, 1, 1], [], []>} : vector<256x32xbf16>, vector<32x128xbf16>, vector<256x128xf32> -> vector<256x128xf32>
    %c0_27 = arith.constant 0 : index
    %c0_28 = arith.constant 0 : index
    %35 = vector.load %arg11[%c0_27, %c0_28] : memref<1x128xf32, #tpu.memory_space<vmem>>, vector<1x128xf32>
    %36 = vector.broadcast %35 : vector<1x128xf32> to vector<256x128xf32>
    %37 = arith.addf %34, %36 : vector<256x128xf32>
    %38 = arith.truncf %37 : vector<256x128xf32> to vector<256x128xbf16>
    %c0_29 = arith.constant 0 : index
    %c0_30 = arith.constant 0 : index
    %39 = vector.load %arg12[%c0_29, %c0_30] : memref<256x128xbf16, #tpu.memory_space<vmem>>, vector<256x128xbf16>
    tpu.vector_store %arg12[%c0_29, %c0_30], %38 {strides = array<i32>} : memref<256x128xbf16, #tpu.memory_space<vmem>>, vector<256x128xbf16>,
    return
  }
  func.func @transform_0(%arg0: i32) -> (i32, i32) {
    %c0_i32 = arith.constant 0 : i32
    %c0_i32_0 = arith.constant 0 : i32
    return %arg0, %c0_i32 : i32, i32
  }
  func.func @transform_1(%arg0: i32) -> (i32, i32) {
    %c0_i32 = arith.constant 0 : i32
    %c0_i32_0 = arith.constant 0 : i32
    %c0_i32_1 = arith.constant 0 : i32
    return %c0_i32, %c0_i32_0 : i32, i32
  }
  func.func @transform_2(%arg0: i32) -> (i32, i32) {
    %c0_i32 = arith.constant 0 : i32
    %c0_i32_0 = arith.constant 0 : i32
    %c0_i32_1 = arith.constant 0 : i32
    return %c0_i32, %c0_i32_0 : i32, i32
  }
  func.func @transform_3(%arg0: i32) -> (i32, i32) {
    %c0_i32 = arith.constant 0 : i32
    %c0_i32_0 = arith.constant 0 : i32
    %c0_i32_1 = arith.constant 0 : i32
    return %c0_i32, %c0_i32_0 : i32, i32
  }
  func.func @transform_4(%arg0: i32) -> (i32, i32) {
    %c0_i32 = arith.constant 0 : i32
    %c0_i32_0 = arith.constant 0 : i32
    %c0_i32_1 = arith.constant 0 : i32
    return %c0_i32, %c0_i32_0 : i32, i32
  }
  func.func @transform_5(%arg0: i32) -> (i32, i32) {
    %c0_i32 = arith.constant 0 : i32
    %c0_i32_0 = arith.constant 0 : i32
    %c0_i32_1 = arith.constant 0 : i32
    return %c0_i32, %c0_i32_0 : i32, i32
  }
  func.func @transform_6(%arg0: i32) -> (i32, i32) {
    %c0_i32 = arith.constant 0 : i32
    %c0_i32_0 = arith.constant 0 : i32
    %c0_i32_1 = arith.constant 0 : i32
    return %c0_i32, %c0_i32_0 : i32, i32
  }
  func.func @transform_7(%arg0: i32) -> (i32, i32) {
    %c0_i32 = arith.constant 0 : i32
    %c0_i32_0 = arith.constant 0 : i32
    %c0_i32_1 = arith.constant 0 : i32
    return %c0_i32, %c0_i32_0 : i32, i32
  }
  func.func @transform_8(%arg0: i32) -> (i32, i32) {
    %c0_i32 = arith.constant 0 : i32
    %c0_i32_0 = arith.constant 0 : i32
    %c0_i32_1 = arith.constant 0 : i32
    return %c0_i32, %c0_i32_0 : i32, i32
  }
  func.func @transform_9(%arg0: i32) -> (i32, i32) {
    %c0_i32 = arith.constant 0 : i32
    %c0_i32_0 = arith.constant 0 : i32
    %c0_i32_1 = arith.constant 0 : i32
    return %c0_i32, %c0_i32_0 : i32, i32
  }
  func.func @transform_10(%arg0: i32) -> (i32, i32) {
    %c0_i32 = arith.constant 0 : i32
    %c0_i32_0 = arith.constant 0 : i32
    %c0_i32_1 = arith.constant 0 : i32
    return %c0_i32, %c0_i32_0 : i32, i32
  }
  func.func @transform_11(%arg0: i32) -> (i32, i32) {
    %c0_i32 = arith.constant 0 : i32
    %c0_i32_0 = arith.constant 0 : i32
    return %arg0, %c0_i32 : i32, i32
  }
}

</mosaic_0001>

<llo_original>
// kernel: dnn_forward.1
$region0: #{dnn_forward.1}
  #allocation0 [shape = 'u32[]', space=smem, size = 0x4, offset = 0x4, fixed_abs, tag = 'smem constant byte address 0x4 - core index']
  #allocation1 [shape = 'u32[144,128]{1,0:T(1,128)}', space=vmem, size = 0x12000, scoped, tag = 'internal scratch']
  %s0 = inlined_call_operand.vmem [shape: bf16[256,32], index: 0, kind: input, shape index: {}]
  %s1 = inlined_call_operand.vmem [shape: bf16[32,256], index: 1, kind: input, shape index: {}]
  %s2 = inlined_call_operand.vmem [shape: f32[1,256], index: 2, kind: input, shape index: {}]
  %s3 = inlined_call_operand.vmem [shape: bf16[256,128], index: 3, kind: input, shape index: {}]
  %s4 = inlined_call_operand.vmem [shape: f32[1,128], index: 4, kind: input, shape index: {}]
  %s5 = inlined_call_operand.vmem [shape: bf16[128,64], index: 5, kind: input, shape index: {}]
  %s6 = inlined_call_operand.vmem [shape: f32[1,64], index: 6, kind: input, shape index: {}]
  %s7 = inlined_call_operand.vmem [shape: bf16[64,32], index: 7, kind: input, shape index: {}]
  %s8 = inlined_call_operand.vmem [shape: f32[1,32], index: 8, kind: input, shape index: {}]
  %s9 = inlined_call_operand.vmem [shape: bf16[32,128], index: 9, kind: input, shape index: {}]
  %s10 = inlined_call_operand.vmem [shape: f32[1,128], index: 10, kind: input, shape index: {}]
  %s11 = inlined_call_operand.hbm [shape: bf16[256,128], index: 11, kind: output, shape index: {}]
  %s12 = sld [smem:[#allocation0]]
  $region54: #{dnn_forward.1} parent=0
    _
  %s14 = ssub.s32 1, %s12
  %s15 = scalar_select 0, %s14, %s12
  $region1: #{dnn_forward.1} parent=0
    #allocation2 [shape = 'u8[65536]{0}', space=vmem, size = 0x10000, scoped, tag = 'output window, operand 0, single buffered']
    #allocation3 [shape = 's32[1]{0}', space=sflag, size = 0x4, scoped, tag = 'scoped memory for dnn_forward.1']
    %16 = vsyncpa [#allocation3], 0
    // Predicated region
    $region2: #{dnn_forward.1} parent=1 // pred_check
      _
    $region3: #{dnn_forward.1} parent=1 // pred_check_branch
      %18 = sbr.rel (0) target = $region5
    $region4: #{dnn_forward.1} parent=1 // pred_region
      _
    $region5: #{dnn_forward.1} parent=1 // pred_fallthru
      _
    // Predicated region
    $region6: #{dnn_forward.1} parent=1 // pred_check
      _
    $region7: #{dnn_forward.1} parent=1 // pred_check_branch
      %20 = sbr.rel (0) target = $region9
    $region8: #{dnn_forward.1} parent=1 // pred_region
      _
    $region9: #{dnn_forward.1} parent=1 // pred_fallthru
      _
    // Predicated region
    $region10: #{dnn_forward.1} parent=1 // pred_check
      _
    $region11: #{dnn_forward.1} parent=1 // pred_check_branch
      %22 = sbr.rel (0) target = $region13
    $region12: #{dnn_forward.1} parent=1 // pred_region
      _
    $region13: #{dnn_forward.1} parent=1 // pred_fallthru
      _
    // Predicated region
    $region14: #{dnn_forward.1} parent=1 // pred_check
      _
    $region15: #{dnn_forward.1} parent=1 // pred_check_branch
      %24 = sbr.rel (0) target = $region17
    $region16: #{dnn_forward.1} parent=1 // pred_region
      _
    $region17: #{dnn_forward.1} parent=1 // pred_fallthru
      _
    // Predicated region
    $region18: #{dnn_forward.1} parent=1 // pred_check
      _
    $region19: #{dnn_forward.1} parent=1 // pred_check_branch
      %26 = sbr.rel (0) target = $region21
    $region20: #{dnn_forward.1} parent=1 // pred_region
      _
    $region21: #{dnn_forward.1} parent=1 // pred_fallthru
      _
    // Predicated region
    $region22: #{dnn_forward.1} parent=1 // pred_check
      _
    $region23: #{dnn_forward.1} parent=1 // pred_check_branch
      %28 = sbr.rel (0) target = $region25
    $region24: #{dnn_forward.1} parent=1 // pred_region
      _
    $region25: #{dnn_forward.1} parent=1 // pred_fallthru
      _
    // Predicated region
    $region26: #{dnn_forward.1} parent=1 // pred_check
      _
    $region27: #{dnn_forward.1} parent=1 // pred_check_branch
      %30 = sbr.rel (0) target = $region29
    $region28: #{dnn_forward.1} parent=1 // pred_region
      _
    $region29: #{dnn_forward.1} parent=1 // pred_fallthru
      _
    // Predicated region
    $region30: #{dnn_forward.1} parent=1 // pred_check
      _
    $region31: #{dnn_forward.1} parent=1 // pred_check_branch
      %32 = sbr.rel (0) target = $region33
    $region32: #{dnn_forward.1} parent=1 // pred_region
      _
    $region33: #{dnn_forward.1} parent=1 // pred_fallthru
      _
    // Predicated region
    $region34: #{dnn_forward.1} parent=1 // pred_check
      _
    $region35: #{dnn_forward.1} parent=1 // pred_check_branch
      %34 = sbr.rel (0) target = $region37
    $region36: #{dnn_forward.1} parent=1 // pred_region
      _
    $region37: #{dnn_forward.1} parent=1 // pred_fallthru
      _
    // Predicated region
    $region38: #{dnn_forward.1} parent=1 // pred_check
      _
    $region39: #{dnn_forward.1} parent=1 // pred_check_branch
      %36 = sbr.rel (0) target = $region41
    $region40: #{dnn_forward.1} parent=1 // pred_region
      _
    $region41: #{dnn_forward.1} parent=1 // pred_fallthru
      _
    // Predicated region
    $region42: #{dnn_forward.1} parent=1 // pred_check
      _
    $region43: #{dnn_forward.1} parent=1 // pred_check_branch
      %38 = sbr.rel (0) target = $region45
    $region44: #{dnn_forward.1} parent=1 // pred_region
      _
    $region45: #{dnn_forward.1} parent=1 // pred_fallthru
      _
    %v40 = vld [vmem:[%s0] sm:$0xf]
    %v41 = vld [vmem:[%s0 + $0x4] sm:$0xf]
    %v42 = vld [vmem:[%s0 + $0x8] sm:$0xf]
    %v43 = vld [vmem:[%s0 + $0xc] sm:$0xf]
    %v44 = vld [vmem:[%s0 + $0x10] sm:$0xf]
    %v45 = vld [vmem:[%s0 + $0x14] sm:$0xf]
    %v46 = vld [vmem:[%s0 + $0x18] sm:$0xf]
    %v47 = vld [vmem:[%s0 + $0x1c] sm:$0xf]
    %v48 = vld [vmem:[%s0 + $0x20] sm:$0xf]
    %v49 = vld [vmem:[%s0 + $0x24] sm:$0xf]
    %v50 = vld [vmem:[%s0 + $0x28] sm:$0xf]
    %v51 = vld [vmem:[%s0 + $0x2c] sm:$0xf]
    %v52 = vld [vmem:[%s0 + $0x30] sm:$0xf]
    %v53 = vld [vmem:[%s0 + $0x34] sm:$0xf]
    %v54 = vld [vmem:[%s0 + $0x38] sm:$0xf]
    %v55 = vld [vmem:[%s0 + $0x3c] sm:$0xf]
    %v56 = vld [vmem:[%s0 + $0x40] sm:$0xf]
    %v57 = vld [vmem:[%s0 + $0x44] sm:$0xf]
    %v58 = vld [vmem:[%s0 + $0x48] sm:$0xf]
    %v59 = vld [vmem:[%s0 + $0x4c] sm:$0xf]
    %v60 = vld [vmem:[%s0 + $0x50] sm:$0xf]
    %v61 = vld [vmem:[%s0 + $0x54] sm:$0xf]
    %v62 = vld [vmem:[%s0 + $0x58] sm:$0xf]
    %v63 = vld [vmem:[%s0 + $0x5c] sm:$0xf]
    %v64 = vld [vmem:[%s0 + $0x60] sm:$0xf]
    %v65 = vld [vmem:[%s0 + $0x64] sm:$0xf]
    %v66 = vld [vmem:[%s0 + $0x68] sm:$0xf]
    %v67 = vld [vmem:[%s0 + $0x6c] sm:$0xf]
    %v68 = vld [vmem:[%s0 + $0x70] sm:$0xf]
    %v69 = vld [vmem:[%s0 + $0x74] sm:$0xf]
    %v70 = vld [vmem:[%s0 + $0x78] sm:$0xf]
    %v71 = vld [vmem:[%s0 + $0x7c] sm:$0xf]
    %v72 = vld [vmem:[%s1] sm:$0xff]
    %v73 = vld [vmem:[%s1 + $0x8] sm:$0xff]
    %v74 = vld [vmem:[%s1 + $0x10] sm:$0xff]
    %v75 = vld [vmem:[%s1 + $0x18] sm:$0xff]
    %v76 = vld [vmem:[%s2] sm:$0x3]
    %v78 = vlaneseq
    %v79 = vshrl.u32 %v78, 7
    %v80 = vsub.s32 0, %v79
    %v81 = vrot.slane %v76, %v80
    %v82 = vlaneseq
    %v83 = vshrl.u32 %v82, 7
    %v84 = vsub.s32 1, %v83
    %v85 = vrot.slane %v76, %v84
    %v120 = vunpack.c.l.b16 %v40
    %v121 = vunpack.c.l.b16 %v41
    %v122 = vunpack.c.l.b16 %v42
    %v123 = vunpack.c.l.b16 %v43
    %v124 = vunpack.c.l.b16 %v44
    %v125 = vunpack.c.l.b16 %v45
    %v126 = vunpack.c.l.b16 %v46
    %v127 = vunpack.c.l.b16 %v47
    %v128 = vunpack.c.l.b16 %v48
    %v129 = vunpack.c.l.b16 %v49
    %v130 = vunpack.c.l.b16 %v50
    %v131 = vunpack.c.l.b16 %v51
    %v132 = vunpack.c.l.b16 %v52
    %v133 = vunpack.c.l.b16 %v53
    %v134 = vunpack.c.l.b16 %v54
    %v135 = vunpack.c.l.b16 %v55
    %v136 = vunpack.c.l.b16 %v56
    %v137 = vunpack.c.l.b16 %v57
    %v138 = vunpack.c.l.b16 %v58
    %v139 = vunpack.c.l.b16 %v59
    %v140 = vunpack.c.l.b16 %v60
    %v141 = vunpack.c.l.b16 %v61
    %v142 = vunpack.c.l.b16 %v62
    %v143 = vunpack.c.l.b16 %v63
    %v144 = vunpack.c.l.b16 %v64
    %v145 = vunpack.c.l.b16 %v65
    %v146 = vunpack.c.l.b16 %v66
    %v147 = vunpack.c.l.b16 %v67
    %v148 = vunpack.c.l.b16 %v68
    %v149 = vunpack.c.l.b16 %v69
    %v150 = vunpack.c.l.b16 %v70
    %v151 = vunpack.c.l.b16 %v71
    %v152 = vpack.c.b16 %v121, %v120
    %v153 = vpack.c.b16 %v123, %v122
    %v154 = vpack.c.b16 %v125, %v124
    %v155 = vpack.c.b16 %v127, %v126
    %v156 = vpack.c.b16 %v129, %v128
    %v157 = vpack.c.b16 %v131, %v130
    %v158 = vpack.c.b16 %v133, %v132
    %v159 = vpack.c.b16 %v135, %v134
    %v160 = vpack.c.b16 %v137, %v136
    %v161 = vpack.c.b16 %v139, %v138
    %v162 = vpack.c.b16 %v141, %v140
    %v163 = vpack.c.b16 %v143, %v142
    %v164 = vpack.c.b16 %v145, %v144
    %v165 = vpack.c.b16 %v147, %v146
    %v166 = vpack.c.b16 %v149, %v148
    %v167 = vpack.c.b16 %v151, %v150
    %v172 = vunpack.c.l.b16 %v72
    %v173 = vunpack.c.h.b16 %v72
    %v174 = vunpack.c.l.b16 %v73
    %v175 = vunpack.c.h.b16 %v73
    %v176 = vunpack.c.l.b16 %v74
    %v177 = vunpack.c.h.b16 %v74
    %v178 = vunpack.c.l.b16 %v75
    %v179 = vunpack.c.h.b16 %v75
    %v180 = vpack.c.b16 %v174, %v172
    %v181 = vpack.c.b16 %v175, %v173
    %v182 = vpack.c.b16 %v178, %v176
    %v183 = vpack.c.b16 %v179, %v177
    %vm188 = vcmask 261120
    %v190 = vsel %vm188, %v152, 0
    %v193 = vsel %vm188, %v153, 0
    %v196 = vsel %vm188, %v154, 0
    %v199 = vsel %vm188, %v155, 0
    %v202 = vsel %vm188, %v156, 0
    %v205 = vsel %vm188, %v157, 0
    %v208 = vsel %vm188, %v158, 0
    %v211 = vsel %vm188, %v159, 0
    %v214 = vsel %vm188, %v160, 0
    %v217 = vsel %vm188, %v161, 0
    %v220 = vsel %vm188, %v162, 0
    %v223 = vsel %vm188, %v163, 0
    %v226 = vsel %vm188, %v164, 0
    %v229 = vsel %vm188, %v165, 0
    %v232 = vsel %vm188, %v166, 0
    %v235 = vsel %vm188, %v167, 0
    %237 = vmatprep.subr.bf16.mxu0 0
    %238 = vmatpush1.bf16.msra.mxu0 0
    %239 = vmatprep.subr.bf16.mxu0 0
    %240 = vmatpush1.bf16.msra.mxu0 0
    %241 = vmatprep.subr.bf16.mxu0 0
    %242 = vmatpush1.bf16.msra.mxu0 0
    %243 = vmatprep.subr.bf16.mxu0 0
    %244 = vmatpush1.bf16.msra.mxu0 0
    %245 = vmatprep.subr.bf16.mxu0 0
    %246 = vmatpush1.bf16.msra.mxu0 0
    %247 = vmatprep.subr.bf16.mxu0 0
    %248 = vmatpush1.bf16.msra.mxu0 0
    %249 = vmatprep.subr.bf16.mxu0 %v183
    %250 = vmatpush1.bf16.msra.mxu0 %v182
    %251 = vmatprep.subr.bf16.mxu0 %v181
    %252 = vmatpush1.bf16.msra.mxu0 %v180
    %253 = vmatprep.subr.bf16.mxu0 0
    %254 = vmatpush2.bf16.msra.mxu0 0
    %255 = vmatprep.subr.bf16.mxu0 0
    %256 = vmatpush2.bf16.msra.mxu0 0
    %257 = vmatprep.subr.bf16.mxu0 0
    %258 = vmatpush2.bf16.msra.mxu0 0
    %259 = vmatprep.subr.bf16.mxu0 0
    %260 = vmatpush2.bf16.msra.mxu0 0
    %261 = vmatprep.subr.bf16.mxu0 0
    %262 = vmatpush2.bf16.msra.mxu0 0
    %263 = vmatprep.subr.bf16.mxu0 0
    %264 = vmatpush2.bf16.msra.mxu0 0
    %265 = vmatprep.subr.bf16.mxu0 0
    %266 = vmatpush2.bf16.msra.mxu0 0
    %267 = vmatprep.subr.bf16.mxu0 0
    %268 = vmatpush2.bf16.msra.mxu0 0
    %269 = vmatprep.mubr.bf16.mxu0 0
    %270 = vmatmul.mubr.bf16.gmra.mxu0 %v190
    %v271 = vpop.f32.mrf.mxu0
    %v272 = vadd.f32 %v81, %v271
    %v273 = vpop.f32.mrf.mxu0
    %v274 = vadd.f32 %v85, %v273
    %v275 = vpop.f32.mrf.mxu0
    %v276 = vadd.f32 %v81, %v275
    %v277 = vpop.f32.mrf.mxu0
    %v278 = vadd.f32 %v85, %v277
    %279 = vmatprep.mubr.bf16.mxu0 0
    %280 = vmatmul.mubr.bf16.gmra.mxu0 %v193
    %v281 = vpop.f32.mrf.mxu0
    %v282 = vadd.f32 %v81, %v281
    %v283 = vpop.f32.mrf.mxu0
    %v284 = vadd.f32 %v85, %v283
    %v285 = vpop.f32.mrf.mxu0
    %v286 = vadd.f32 %v81, %v285
    %v287 = vpop.f32.mrf.mxu0
    %v288 = vadd.f32 %v85, %v287
    %289 = vmatprep.mubr.bf16.mxu0 0
    %290 = vmatmul.mubr.bf16.gmra.mxu0 %v196
    %v291 = vpop.f32.mrf.mxu0
    %v292 = vadd.f32 %v81, %v291
    %v293 = vpop.f32.mrf.mxu0
    %v294 = vadd.f32 %v85, %v293
    %v295 = vpop.f32.mrf.mxu0
    %v296 = vadd.f32 %v81, %v295
    %v297 = vpop.f32.mrf.mxu0
    %v298 = vadd.f32 %v85, %v297
    %299 = vmatprep.mubr.bf16.mxu0 0
    %300 = vmatmul.mubr.bf16.gmra.mxu0 %v199
    %v301 = vpop.f32.mrf.mxu0
    %v302 = vadd.f32 %v81, %v301
    %v303 = vpop.f32.mrf.mxu0
    %v304 = vadd.f32 %v85, %v303
    %v305 = vpop.f32.mrf.mxu0
    %v306 = vadd.f32 %v81, %v305
    %v307 = vpop.f32.mrf.mxu0
    %v308 = vadd.f32 %v85, %v307
    %309 = vmatprep.mubr.bf16.mxu0 0
    %310 = vmatmul.mubr.bf16.gmra.mxu0 %v202
    %v311 = vpop.f32.mrf.mxu0
    %v312 = vadd.f32 %v81, %v311
    %v313 = vpop.f32.mrf.mxu0
    %v314 = vadd.f32 %v85, %v313
    %v315 = vpop.f32.mrf.mxu0
    %v316 = vadd.f32 %v81, %v315
    %v317 = vpop.f32.mrf.mxu0
    %v318 = vadd.f32 %v85, %v317
    %319 = vmatprep.mubr.bf16.mxu0 0
    %320 = vmatmul.mubr.bf16.gmra.mxu0 %v205
    %v321 = vpop.f32.mrf.mxu0
    %v322 = vadd.f32 %v81, %v321
    %v323 = vpop.f32.mrf.mxu0
    %v324 = vadd.f32 %v85, %v323
    %v325 = vpop.f32.mrf.mxu0
    %v326 = vadd.f32 %v81, %v325
    %v327 = vpop.f32.mrf.mxu0
    %v328 = vadd.f32 %v85, %v327
    %329 = vmatprep.mubr.bf16.mxu0 0
    %330 = vmatmul.mubr.bf16.gmra.mxu0 %v208
    %v331 = vpop.f32.mrf.mxu0
    %v332 = vadd.f32 %v81, %v331
    %v333 = vpop.f32.mrf.mxu0
    %v334 = vadd.f32 %v85, %v333
    %v335 = vpop.f32.mrf.mxu0
    %v336 = vadd.f32 %v81, %v335
    %v337 = vpop.f32.mrf.mxu0
    %v338 = vadd.f32 %v85, %v337
    %339 = vmatprep.mubr.bf16.mxu0 0
    %340 = vmatmul.mubr.bf16.gmra.mxu0 %v211
    %v341 = vpop.f32.mrf.mxu0
    %v342 = vadd.f32 %v81, %v341
    %v343 = vpop.f32.mrf.mxu0
    %v344 = vadd.f32 %v85, %v343
    %v345 = vpop.f32.mrf.mxu0
    %v346 = vadd.f32 %v81, %v345
    %v347 = vpop.f32.mrf.mxu0
    %v348 = vadd.f32 %v85, %v347
    %349 = vmatprep.mubr.bf16.mxu0 0
    %350 = vmatmul.mubr.bf16.gmra.mxu0 %v214
    %v351 = vpop.f32.mrf.mxu0
    %v352 = vadd.f32 %v81, %v351
    %v353 = vpop.f32.mrf.mxu0
    %v354 = vadd.f32 %v85, %v353
    %v355 = vpop.f32.mrf.mxu0
    %v356 = vadd.f32 %v81, %v355
    %v357 = vpop.f32.mrf.mxu0
    %v358 = vadd.f32 %v85, %v357
    %359 = vmatprep.mubr.bf16.mxu0 0
    %360 = vmatmul.mubr.bf16.gmra.mxu0 %v217
    %v361 = vpop.f32.mrf.mxu0
    %v362 = vadd.f32 %v81, %v361
    %v363 = vpop.f32.mrf.mxu0
    %v364 = vadd.f32 %v85, %v363
    %v365 = vpop.f32.mrf.mxu0
    %v366 = vadd.f32 %v81, %v365
    %v367 = vpop.f32.mrf.mxu0
    %v368 = vadd.f32 %v85, %v367
    %369 = vmatprep.mubr.bf16.mxu0 0
    %370 = vmatmul.mubr.bf16.gmra.mxu0 %v220
    %v371 = vpop.f32.mrf.mxu0
    %v372 = vadd.f32 %v81, %v371
    %v373 = vpop.f32.mrf.mxu0
    %v374 = vadd.f32 %v85, %v373
    %v375 = vpop.f32.mrf.mxu0
    %v376 = vadd.f32 %v81, %v375
    %v377 = vpop.f32.mrf.mxu0
    %v378 = vadd.f32 %v85, %v377
    %379 = vmatprep.mubr.bf16.mxu0 0
    %380 = vmatmul.mubr.bf16.gmra.mxu0 %v223
    %v381 = vpop.f32.mrf.mxu0
    %v382 = vadd.f32 %v81, %v381
    %v383 = vpop.f32.mrf.mxu0
    %v384 = vadd.f32 %v85, %v383
    %v385 = vpop.f32.mrf.mxu0
    %v386 = vadd.f32 %v81, %v385
    %v387 = vpop.f32.mrf.mxu0
    %v388 = vadd.f32 %v85, %v387
    %389 = vmatprep.mubr.bf16.mxu0 0
    %390 = vmatmul.mubr.bf16.gmra.mxu0 %v226
    %v391 = vpop.f32.mrf.mxu0
    %v392 = vadd.f32 %v81, %v391
    %v393 = vpop.f32.mrf.mxu0
    %v394 = vadd.f32 %v85, %v393
    %v395 = vpop.f32.mrf.mxu0
    %v396 = vadd.f32 %v81, %v395
    %v397 = vpop.f32.mrf.mxu0
    %v398 = vadd.f32 %v85, %v397
    %399 = vmatprep.mubr.bf16.mxu0 0
    %400 = vmatmul.mubr.bf16.gmra.mxu0 %v229
    %v401 = vpop.f32.mrf.mxu0
    %v402 = vadd.f32 %v81, %v401
    %v403 = vpop.f32.mrf.mxu0
    %v404 = vadd.f32 %v85, %v403
    %v405 = vpop.f32.mrf.mxu0
    %v406 = vadd.f32 %v81, %v405
    %v407 = vpop.f32.mrf.mxu0
    %v408 = vadd.f32 %v85, %v407
    %409 = vmatprep.mubr.bf16.mxu0 0
    %410 = vmatmul.mubr.bf16.gmra.mxu0 %v232
    %v411 = vpop.f32.mrf.mxu0
    %v412 = vadd.f32 %v81, %v411
    %v413 = vpop.f32.mrf.mxu0
    %v414 = vadd.f32 %v85, %v413
    %v415 = vpop.f32.mrf.mxu0
    %v416 = vadd.f32 %v81, %v415
    %v417 = vpop.f32.mrf.mxu0
    %v418 = vadd.f32 %v85, %v417
    %419 = vmatprep.mubr.bf16.mxu0 0
    %420 = vmatmul.mubr.bf16.gmra.mxu0 %v235
    %v421 = vpop.f32.mrf.mxu0
    %v422 = vadd.f32 %v81, %v421
    %v423 = vpop.f32.mrf.mxu0
    %v424 = vadd.f32 %v85, %v423
    %v425 = vpop.f32.mrf.mxu0
    %v426 = vadd.f32 %v81, %v425
    %v427 = vpop.f32.mrf.mxu0
    %v428 = vadd.f32 %v85, %v427
    %429 = vdwg.mxu0
    %v430 = vmax.f32 %v272, 0.0
    %v431 = vmax.f32 %v274, 0.0
    %v432 = vmax.f32 %v276, 0.0
    %v433 = vmax.f32 %v278, 0.0
    %v434 = vmax.f32 %v282, 0.0
    %v435 = vmax.f32 %v284, 0.0
    %v436 = vmax.f32 %v286, 0.0
    %v437 = vmax.f32 %v288, 0.0
    %v438 = vmax.f32 %v292, 0.0
    %v439 = vmax.f32 %v294, 0.0
    %v440 = vmax.f32 %v296, 0.0
    %v441 = vmax.f32 %v298, 0.0
    %v442 = vmax.f32 %v302, 0.0
    %v443 = vmax.f32 %v304, 0.0
    %v444 = vmax.f32 %v306, 0.0
    %v445 = vmax.f32 %v308, 0.0
    %v446 = vmax.f32 %v312, 0.0
    %v447 = vmax.f32 %v314, 0.0
    %v448 = vmax.f32 %v316, 0.0
    %v449 = vmax.f32 %v318, 0.0
    %v450 = vmax.f32 %v322, 0.0
    %v451 = vmax.f32 %v324, 0.0
    %v452 = vmax.f32 %v326, 0.0
    %v453 = vmax.f32 %v328, 0.0
    %v454 = vmax.f32 %v332, 0.0
    %v455 = vmax.f32 %v334, 0.0
    %v456 = vmax.f32 %v336, 0.0
    %v457 = vmax.f32 %v338, 0.0
    %v458 = vmax.f32 %v342, 0.0
    %v459 = vmax.f32 %v344, 0.0
    %v460 = vmax.f32 %v346, 0.0
    %v461 = vmax.f32 %v348, 0.0
    %v462 = vmax.f32 %v352, 0.0
    %v463 = vmax.f32 %v354, 0.0
    %v464 = vmax.f32 %v356, 0.0
    %v465 = vmax.f32 %v358, 0.0
    %v466 = vmax.f32 %v362, 0.0
    %v467 = vmax.f32 %v364, 0.0
    %v468 = vmax.f32 %v366, 0.0
    %v469 = vmax.f32 %v368, 0.0
    %v470 = vmax.f32 %v372, 0.0
    %v471 = vmax.f32 %v374, 0.0
    %v472 = vmax.f32 %v376, 0.0
    %v473 = vmax.f32 %v378, 0.0
    %v474 = vmax.f32 %v382, 0.0
    %v475 = vmax.f32 %v384, 0.0
    %v476 = vmax.f32 %v386, 0.0
    %v477 = vmax.f32 %v388, 0.0
    %v478 = vmax.f32 %v392, 0.0
    %v479 = vmax.f32 %v394, 0.0
    %v480 = vmax.f32 %v396, 0.0
    %v481 = vmax.f32 %v398, 0.0
    %v482 = vmax.f32 %v402, 0.0
    %v483 = vmax.f32 %v404, 0.0
    %v484 = vmax.f32 %v406, 0.0
    %v485 = vmax.f32 %v408, 0.0
    %v486 = vmax.f32 %v412, 0.0
    %v487 = vmax.f32 %v414, 0.0
    %v488 = vmax.f32 %v416, 0.0
    %v489 = vmax.f32 %v418, 0.0
    %v490 = vmax.f32 %v422, 0.0
    %v491 = vmax.f32 %v424, 0.0
    %v492 = vmax.f32 %v426, 0.0
    %v493 = vmax.f32 %v428, 0.0
    %v494 = vpack.c.bf16 %v432, %v430
    %v495 = vpack.c.bf16 %v433, %v431
    %v496 = vpack.c.bf16 %v436, %v434
    %v497 = vpack.c.bf16 %v437, %v435
    %v498 = vpack.c.bf16 %v440, %v438
    %v499 = vpack.c.bf16 %v441, %v439
    %v500 = vpack.c.bf16 %v444, %v442
    %v501 = vpack.c.bf16 %v445, %v443
    %v502 = vpack.c.bf16 %v448, %v446
    %v503 = vpack.c.bf16 %v449, %v447
    %v504 = vpack.c.bf16 %v452, %v450
    %v505 = vpack.c.bf16 %v453, %v451
    %v506 = vpack.c.bf16 %v456, %v454
    %v507 = vpack.c.bf16 %v457, %v455
    %v508 = vpack.c.bf16 %v460, %v458
    %v509 = vpack.c.bf16 %v461, %v459
    %v510 = vpack.c.bf16 %v464, %v462
    %v511 = vpack.c.bf16 %v465, %v463
    %v512 = vpack.c.bf16 %v468, %v466
    %v513 = vpack.c.bf16 %v469, %v467
    %v514 = vpack.c.bf16 %v472, %v470
    %v515 = vpack.c.bf16 %v473, %v471
    %v516 = vpack.c.bf16 %v476, %v474
    %v517 = vpack.c.bf16 %v477, %v475
    %v518 = vpack.c.bf16 %v480, %v478
    %v519 = vpack.c.bf16 %v481, %v479
    %v520 = vpack.c.bf16 %v484, %v482
    %v521 = vpack.c.bf16 %v485, %v483
    %v522 = vpack.c.bf16 %v488, %v486
    %v523 = vpack.c.bf16 %v489, %v487
    %v524 = vpack.c.bf16 %v492, %v490
    %v525 = vpack.c.bf16 %v493, %v491
    %v526 = vld [vmem:[%s3] sm:$0xf]
    %v527 = vld [vmem:[%s3 + $0x4] sm:$0xf]
    %v528 = vld [vmem:[%s3 + $0x8] sm:$0xf]
    %v529 = vld [vmem:[%s3 + $0xc] sm:$0xf]
    %v530 = vld [vmem:[%s3 + $0x10] sm:$0xf]
    %v531 = vld [vmem:[%s3 + $0x14] sm:$0xf]
    %v532 = vld [vmem:[%s3 + $0x18] sm:$0xf]
    %v533 = vld [vmem:[%s3 + $0x1c] sm:$0xf]
    %v534 = vld [vmem:[%s3 + $0x20] sm:$0xf]
    %v535 = vld [vmem:[%s3 + $0x24] sm:$0xf]
    %v536 = vld [vmem:[%s3 + $0x28] sm:$0xf]
    %v537 = vld [vmem:[%s3 + $0x2c] sm:$0xf]
    %v538 = vld [vmem:[%s3 + $0x30] sm:$0xf]
    %v539 = vld [vmem:[%s3 + $0x34] sm:$0xf]
    %v540 = vld [vmem:[%s3 + $0x38] sm:$0xf]
    %v541 = vld [vmem:[%s3 + $0x3c] sm:$0xf]
    %v542 = vld [vmem:[%s3 + $0x40] sm:$0xf]
    %v543 = vld [vmem:[%s3 + $0x44] sm:$0xf]
    %v544 = vld [vmem:[%s3 + $0x48] sm:$0xf]
    %v545 = vld [vmem:[%s3 + $0x4c] sm:$0xf]
    %v546 = vld [vmem:[%s3 + $0x50] sm:$0xf]
    %v547 = vld [vmem:[%s3 + $0x54] sm:$0xf]
    %v548 = vld [vmem:[%s3 + $0x58] sm:$0xf]
    %v549 = vld [vmem:[%s3 + $0x5c] sm:$0xf]
    %v550 = vld [vmem:[%s3 + $0x60] sm:$0xf]
    %v551 = vld [vmem:[%s3 + $0x64] sm:$0xf]
    %v552 = vld [vmem:[%s3 + $0x68] sm:$0xf]
    %v553 = vld [vmem:[%s3 + $0x6c] sm:$0xf]
    %v554 = vld [vmem:[%s3 + $0x70] sm:$0xf]
    %v555 = vld [vmem:[%s3 + $0x74] sm:$0xf]
    %v556 = vld [vmem:[%s3 + $0x78] sm:$0xf]
    %v557 = vld [vmem:[%s3 + $0x7c] sm:$0xf]
    %v558 = vld [vmem:[%s4] sm:$0x1]
    %v560 = vlaneseq
    %v561 = vshrl.u32 %v560, 7
    %v562 = vsub.s32 0, %v561
    %v563 = vrot.slane %v558, %v562
    %v597 = vunpack.c.l.b16 %v526
    %v598 = vunpack.c.l.b16 %v527
    %v599 = vunpack.c.l.b16 %v528
    %v600 = vunpack.c.l.b16 %v529
    %v601 = vunpack.c.l.b16 %v530
    %v602 = vunpack.c.l.b16 %v531
    %v603 = vunpack.c.l.b16 %v532
    %v604 = vunpack.c.l.b16 %v533
    %v605 = vunpack.c.l.b16 %v534
    %v606 = vunpack.c.l.b16 %v535
    %v607 = vunpack.c.l.b16 %v536
    %v608 = vunpack.c.l.b16 %v537
    %v609 = vunpack.c.l.b16 %v538
    %v610 = vunpack.c.l.b16 %v539
    %v611 = vunpack.c.l.b16 %v540
    %v612 = vunpack.c.l.b16 %v541
    %v613 = vunpack.c.l.b16 %v542
    %v614 = vunpack.c.l.b16 %v543
    %v615 = vunpack.c.l.b16 %v544
    %v616 = vunpack.c.l.b16 %v545
    %v617 = vunpack.c.l.b16 %v546
    %v618 = vunpack.c.l.b16 %v547
    %v619 = vunpack.c.l.b16 %v548
    %v620 = vunpack.c.l.b16 %v549
    %v621 = vunpack.c.l.b16 %v550
    %v622 = vunpack.c.l.b16 %v551
    %v623 = vunpack.c.l.b16 %v552
    %v624 = vunpack.c.l.b16 %v553
    %v625 = vunpack.c.l.b16 %v554
    %v626 = vunpack.c.l.b16 %v555
    %v627 = vunpack.c.l.b16 %v556
    %v628 = vunpack.c.l.b16 %v557
    %v629 = vpack.c.b16 %v598, %v597
    %v630 = vpack.c.b16 %v600, %v599
    %v631 = vpack.c.b16 %v602, %v601
    %v632 = vpack.c.b16 %v604, %v603
    %v633 = vpack.c.b16 %v606, %v605
    %v634 = vpack.c.b16 %v608, %v607
    %v635 = vpack.c.b16 %v610, %v609
    %v636 = vpack.c.b16 %v612, %v611
    %v637 = vpack.c.b16 %v614, %v613
    %v638 = vpack.c.b16 %v616, %v615
    %v639 = vpack.c.b16 %v618, %v617
    %v640 = vpack.c.b16 %v620, %v619
    %v641 = vpack.c.b16 %v622, %v621
    %v642 = vpack.c.b16 %v624, %v623
    %v643 = vpack.c.b16 %v626, %v625
    %v644 = vpack.c.b16 %v628, %v627
    %661 = vmatprep.subr.bf16.mxu0 0
    %662 = vmatpush1.bf16.msra.mxu0 %v636
    %663 = vmatprep.subr.bf16.mxu0 0
    %664 = vmatpush1.bf16.msra.mxu0 %v635
    %665 = vmatprep.subr.bf16.mxu0 0
    %666 = vmatpush1.bf16.msra.mxu0 %v634
    %667 = vmatprep.subr.bf16.mxu0 0
    %668 = vmatpush1.bf16.msra.mxu0 %v633
    %669 = vmatprep.subr.bf16.mxu0 0
    %670 = vmatpush1.bf16.msra.mxu0 %v632
    %671 = vmatprep.subr.bf16.mxu0 0
    %672 = vmatpush1.bf16.msra.mxu0 %v631
    %673 = vmatprep.subr.bf16.mxu0 0
    %674 = vmatpush1.bf16.msra.mxu0 %v630
    %675 = vmatprep.subr.bf16.mxu0 0
    %676 = vmatpush1.bf16.msra.mxu0 %v629
    %677 = vmatprep.subr.bf16.mxu0 0
    %678 = vmatpush2.bf16.msra.mxu0 %v644
    %679 = vmatprep.subr.bf16.mxu0 0
    %680 = vmatpush2.bf16.msra.mxu0 %v643
    %681 = vmatprep.subr.bf16.mxu0 0
    %682 = vmatpush2.bf16.msra.mxu0 %v642
    %683 = vmatprep.subr.bf16.mxu0 0
    %684 = vmatpush2.bf16.msra.mxu0 %v641
    %685 = vmatprep.subr.bf16.mxu0 0
    %686 = vmatpush2.bf16.msra.mxu0 %v640
    %687 = vmatprep.subr.bf16.mxu0 0
    %688 = vmatpush2.bf16.msra.mxu0 %v639
    %689 = vmatprep.subr.bf16.mxu0 0
    %690 = vmatpush2.bf16.msra.mxu0 %v638
    %691 = vmatprep.subr.bf16.mxu0 0
    %692 = vmatpush2.bf16.msra.mxu0 %v637
    %693 = vmatprep.mubr.bf16.mxu0 %v495
    %694 = vmatmul.mubr.bf16.gmra.mxu0 %v494
    %v695 = vpop.f32.mrf.mxu0
    %v696 = vadd.f32 %v563, %v695
    %v697 = vpop.f32.mrf.mxu0
    %v698 = vpop.f32.mrf.mxu0
    %v699 = vadd.f32 %v563, %v698
    %v700 = vpop.f32.mrf.mxu0
    %701 = vmatprep.mubr.bf16.mxu0 %v497
    %702 = vmatmul.mubr.bf16.gmra.mxu0 %v496
    %v703 = vpop.f32.mrf.mxu0
    %v704 = vadd.f32 %v563, %v703
    %v705 = vpop.f32.mrf.mxu0
    %v706 = vpop.f32.mrf.mxu0
    %v707 = vadd.f32 %v563, %v706
    %v708 = vpop.f32.mrf.mxu0
    %709 = vmatprep.mubr.bf16.mxu0 %v499
    %710 = vmatmul.mubr.bf16.gmra.mxu0 %v498
    %v711 = vpop.f32.mrf.mxu0
    %v712 = vadd.f32 %v563, %v711
    %v713 = vpop.f32.mrf.mxu0
    %v714 = vpop.f32.mrf.mxu0
    %v715 = vadd.f32 %v563, %v714
    %v716 = vpop.f32.mrf.mxu0
    %717 = vmatprep.mubr.bf16.mxu0 %v501
    %718 = vmatmul.mubr.bf16.gmra.mxu0 %v500
    %v719 = vpop.f32.mrf.mxu0
    %v720 = vadd.f32 %v563, %v719
    %v721 = vpop.f32.mrf.mxu0
    %v722 = vpop.f32.mrf.mxu0
    %v723 = vadd.f32 %v563, %v722
    %v724 = vpop.f32.mrf.mxu0
    %725 = vmatprep.mubr.bf16.mxu0 %v503
    %726 = vmatmul.mubr.bf16.gmra.mxu0 %v502
    %v727 = vpop.f32.mrf.mxu0
    %v728 = vadd.f32 %v563, %v727
    %v729 = vpop.f32.mrf.mxu0
    %v730 = vpop.f32.mrf.mxu0
    %v731 = vadd.f32 %v563, %v730
    %v732 = vpop.f32.mrf.mxu0
    %733 = vmatprep.mubr.bf16.mxu0 %v505
    %734 = vmatmul.mubr.bf16.gmra.mxu0 %v504
    %v735 = vpop.f32.mrf.mxu0
    %v736 = vadd.f32 %v563, %v735
    %v737 = vpop.f32.mrf.mxu0
    %v738 = vpop.f32.mrf.mxu0
    %v739 = vadd.f32 %v563, %v738
    %v740 = vpop.f32.mrf.mxu0
    %741 = vmatprep.mubr.bf16.mxu0 %v507
    %742 = vmatmul.mubr.bf16.gmra.mxu0 %v506
    %v743 = vpop.f32.mrf.mxu0
    %v744 = vadd.f32 %v563, %v743
    %v745 = vpop.f32.mrf.mxu0
    %v746 = vpop.f32.mrf.mxu0
    %v747 = vadd.f32 %v563, %v746
    %v748 = vpop.f32.mrf.mxu0
    %749 = vmatprep.mubr.bf16.mxu0 %v509
    %750 = vmatmul.mubr.bf16.gmra.mxu0 %v508
    %v751 = vpop.f32.mrf.mxu0
    %v752 = vadd.f32 %v563, %v751
    %v753 = vpop.f32.mrf.mxu0
    %v754 = vpop.f32.mrf.mxu0
    %v755 = vadd.f32 %v563, %v754
    %v756 = vpop.f32.mrf.mxu0
    %757 = vmatprep.mubr.bf16.mxu0 %v511
    %758 = vmatmul.mubr.bf16.gmra.mxu0 %v510
    %v759 = vpop.f32.mrf.mxu0
    %v760 = vadd.f32 %v563, %v759
    %v761 = vpop.f32.mrf.mxu0
    %v762 = vpop.f32.mrf.mxu0
    %v763 = vadd.f32 %v563, %v762
    %v764 = vpop.f32.mrf.mxu0
    %765 = vmatprep.mubr.bf16.mxu0 %v513
    %766 = vmatmul.mubr.bf16.gmra.mxu0 %v512
    %v767 = vpop.f32.mrf.mxu0
    %v768 = vadd.f32 %v563, %v767
    %v769 = vpop.f32.mrf.mxu0
    %v770 = vpop.f32.mrf.mxu0
    %v771 = vadd.f32 %v563, %v770
    %v772 = vpop.f32.mrf.mxu0
    %773 = vmatprep.mubr.bf16.mxu0 %v515
    %774 = vmatmul.mubr.bf16.gmra.mxu0 %v514
    %v775 = vpop.f32.mrf.mxu0
    %v776 = vadd.f32 %v563, %v775
    %v777 = vpop.f32.mrf.mxu0
    %v778 = vpop.f32.mrf.mxu0
    %v779 = vadd.f32 %v563, %v778
    %v780 = vpop.f32.mrf.mxu0
    %781 = vmatprep.mubr.bf16.mxu0 %v517
    %782 = vmatmul.mubr.bf16.gmra.mxu0 %v516
    %v783 = vpop.f32.mrf.mxu0
    %v784 = vadd.f32 %v563, %v783
    %v785 = vpop.f32.mrf.mxu0
    %v786 = vpop.f32.mrf.mxu0
    %v787 = vadd.f32 %v563, %v786
    %v788 = vpop.f32.mrf.mxu0
    %789 = vmatprep.mubr.bf16.mxu0 %v519
    %790 = vmatmul.mubr.bf16.gmra.mxu0 %v518
    %v791 = vpop.f32.mrf.mxu0
    %v792 = vadd.f32 %v563, %v791
    %v793 = vpop.f32.mrf.mxu0
    %v794 = vpop.f32.mrf.mxu0
    %v795 = vadd.f32 %v563, %v794
    %v796 = vpop.f32.mrf.mxu0
    %797 = vmatprep.mubr.bf16.mxu0 %v521
    %798 = vmatmul.mubr.bf16.gmra.mxu0 %v520
    %v799 = vpop.f32.mrf.mxu0
    %v800 = vadd.f32 %v563, %v799
    %v801 = vpop.f32.mrf.mxu0
    %v802 = vpop.f32.mrf.mxu0
    %v803 = vadd.f32 %v563, %v802
    %v804 = vpop.f32.mrf.mxu0
    %805 = vmatprep.mubr.bf16.mxu0 %v523
    %806 = vmatmul.mubr.bf16.gmra.mxu0 %v522
    %v807 = vpop.f32.mrf.mxu0
    %v808 = vadd.f32 %v563, %v807
    %v809 = vpop.f32.mrf.mxu0
    %v810 = vpop.f32.mrf.mxu0
    %v811 = vadd.f32 %v563, %v810
    %v812 = vpop.f32.mrf.mxu0
    %813 = vmatprep.mubr.bf16.mxu0 %v525
    %814 = vmatmul.mubr.bf16.gmra.mxu0 %v524
    %v815 = vpop.f32.mrf.mxu0
    %v816 = vadd.f32 %v563, %v815
    %v817 = vpop.f32.mrf.mxu0
    %v818 = vpop.f32.mrf.mxu0
    %v819 = vadd.f32 %v563, %v818
    %v820 = vpop.f32.mrf.mxu0
    %821 = vdwg.mxu0
    %v822 = vmax.f32 %v696, 0.0
    %v823 = vmax.f32 %v699, 0.0
    %v824 = vmax.f32 %v704, 0.0
    %v825 = vmax.f32 %v707, 0.0
    %v826 = vmax.f32 %v712, 0.0
    %v827 = vmax.f32 %v715, 0.0
    %v828 = vmax.f32 %v720, 0.0
    %v829 = vmax.f32 %v723, 0.0
    %v830 = vmax.f32 %v728, 0.0
    %v831 = vmax.f32 %v731, 0.0
    %v832 = vmax.f32 %v736, 0.0
    %v833 = vmax.f32 %v739, 0.0
    %v834 = vmax.f32 %v744, 0.0
    %v835 = vmax.f32 %v747, 0.0
    %v836 = vmax.f32 %v752, 0.0
    %v837 = vmax.f32 %v755, 0.0
    %v838 = vmax.f32 %v760, 0.0
    %v839 = vmax.f32 %v763, 0.0
    %v840 = vmax.f32 %v768, 0.0
    %v841 = vmax.f32 %v771, 0.0
    %v842 = vmax.f32 %v776, 0.0
    %v843 = vmax.f32 %v779, 0.0
    %v844 = vmax.f32 %v784, 0.0
    %v845 = vmax.f32 %v787, 0.0
    %v846 = vmax.f32 %v792, 0.0
    %v847 = vmax.f32 %v795, 0.0
    %v848 = vmax.f32 %v800, 0.0
    %v849 = vmax.f32 %v803, 0.0
    %v850 = vmax.f32 %v808, 0.0
    %v851 = vmax.f32 %v811, 0.0
    %v852 = vmax.f32 %v816, 0.0
    %v853 = vmax.f32 %v819, 0.0
    %v854 = vpack.c.bf16 %v823, %v822
    %v855 = vpack.c.bf16 %v825, %v824
    %v856 = vpack.c.bf16 %v827, %v826
    %v857 = vpack.c.bf16 %v829, %v828
    %v858 = vpack.c.bf16 %v831, %v830
    %v859 = vpack.c.bf16 %v833, %v832
    %v860 = vpack.c.bf16 %v835, %v834
    %v861 = vpack.c.bf16 %v837, %v836
    %v862 = vpack.c.bf16 %v839, %v838
    %v863 = vpack.c.bf16 %v841, %v840
    %v864 = vpack.c.bf16 %v843, %v842
    %v865 = vpack.c.bf16 %v845, %v844
    %v866 = vpack.c.bf16 %v847, %v846
    %v867 = vpack.c.bf16 %v849, %v848
    %v868 = vpack.c.bf16 %v851, %v850
    %v869 = vpack.c.bf16 %v853, %v852
    %v870 = vld [vmem:[%s5] sm:$0xf]
    %v871 = vld [vmem:[%s5 + $0x4] sm:$0xf]
    %v872 = vld [vmem:[%s5 + $0x8] sm:$0xf]
    %v873 = vld [vmem:[%s5 + $0xc] sm:$0xf]
    %v874 = vld [vmem:[%s5 + $0x10] sm:$0xf]
    %v875 = vld [vmem:[%s5 + $0x14] sm:$0xf]
    %v876 = vld [vmem:[%s5 + $0x18] sm:$0xf]
    %v877 = vld [vmem:[%s5 + $0x1c] sm:$0xf]
    %v878 = vld [vmem:[%s5 + $0x20] sm:$0xf]
    %v879 = vld [vmem:[%s5 + $0x24] sm:$0xf]
    %v880 = vld [vmem:[%s5 + $0x28] sm:$0xf]
    %v881 = vld [vmem:[%s5 + $0x2c] sm:$0xf]
    %v882 = vld [vmem:[%s5 + $0x30] sm:$0xf]
    %v883 = vld [vmem:[%s5 + $0x34] sm:$0xf]
    %v884 = vld [vmem:[%s5 + $0x38] sm:$0xf]
    %v885 = vld [vmem:[%s5 + $0x3c] sm:$0xf]
    %v886 = vld [vmem:[%s6] sm:$0x1]
    %v888 = vlaneseq
    %v889 = vshrl.u32 %v888, 7
    %v890 = vsub.s32 0, %v889
    %v891 = vrot.slane %v886, %v890
    %v909 = vunpack.c.l.b16 %v870
    %v910 = vunpack.c.l.b16 %v871
    %v911 = vunpack.c.l.b16 %v872
    %v912 = vunpack.c.l.b16 %v873
    %v913 = vunpack.c.l.b16 %v874
    %v914 = vunpack.c.l.b16 %v875
    %v915 = vunpack.c.l.b16 %v876
    %v916 = vunpack.c.l.b16 %v877
    %v917 = vunpack.c.l.b16 %v878
    %v918 = vunpack.c.l.b16 %v879
    %v919 = vunpack.c.l.b16 %v880
    %v920 = vunpack.c.l.b16 %v881
    %v921 = vunpack.c.l.b16 %v882
    %v922 = vunpack.c.l.b16 %v883
    %v923 = vunpack.c.l.b16 %v884
    %v924 = vunpack.c.l.b16 %v885
    %v925 = vpack.c.b16 %v910, %v909
    %v926 = vpack.c.b16 %v912, %v911
    %v927 = vpack.c.b16 %v914, %v913
    %v928 = vpack.c.b16 %v916, %v915
    %v929 = vpack.c.b16 %v918, %v917
    %v930 = vpack.c.b16 %v920, %v919
    %v931 = vpack.c.b16 %v922, %v921
    %v932 = vpack.c.b16 %v924, %v923
    %941 = vmatprep.subr.bf16.mxu0 0
    %942 = vmatpush1.bf16.msra.mxu0 %v932
    %943 = vmatprep.subr.bf16.mxu0 0
    %944 = vmatpush1.bf16.msra.mxu0 %v931
    %945 = vmatprep.subr.bf16.mxu0 0
    %946 = vmatpush1.bf16.msra.mxu0 %v930
    %947 = vmatprep.subr.bf16.mxu0 0
    %948 = vmatpush1.bf16.msra.mxu0 %v929
    %949 = vmatprep.subr.bf16.mxu0 0
    %950 = vmatpush1.bf16.msra.mxu0 %v928
    %951 = vmatprep.subr.bf16.mxu0 0
    %952 = vmatpush1.bf16.msra.mxu0 %v927
    %953 = vmatprep.subr.bf16.mxu0 0
    %954 = vmatpush1.bf16.msra.mxu0 %v926
    %955 = vmatprep.subr.bf16.mxu0 0
    %956 = vmatpush1.bf16.msra.mxu0 %v925
    %957 = vmatprep.subr.bf16.mxu0 0
    %958 = vmatpush2.bf16.msra.mxu0 0
    %959 = vmatprep.subr.bf16.mxu0 0
    %960 = vmatpush2.bf16.msra.mxu0 0
    %961 = vmatprep.subr.bf16.mxu0 0
    %962 = vmatpush2.bf16.msra.mxu0 0
    %963 = vmatprep.subr.bf16.mxu0 0
    %964 = vmatpush2.bf16.msra.mxu0 0
    %965 = vmatprep.subr.bf16.mxu0 0
    %966 = vmatpush2.bf16.msra.mxu0 0
    %967 = vmatprep.subr.bf16.mxu0 0
    %968 = vmatpush2.bf16.msra.mxu0 0
    %969 = vmatprep.subr.bf16.mxu0 0
    %970 = vmatpush2.bf16.msra.mxu0 0
    %971 = vmatprep.subr.bf16.mxu0 0
    %972 = vmatpush2.bf16.msra.mxu0 0
    %973 = vmatprep.mubr.bf16.mxu0 0
    %974 = vmatmul.mubr.bf16.gmra.mxu0 %v854
    %v975 = vpop.f32.mrf.mxu0
    %v976 = vadd.f32 %v891, %v975
    %v977 = vpop.f32.mrf.mxu0
    %v978 = vpop.f32.mrf.mxu0
    %v979 = vadd.f32 %v891, %v978
    %v980 = vpop.f32.mrf.mxu0
    %981 = vmatprep.mubr.bf16.mxu0 0
    %982 = vmatmul.mubr.bf16.gmra.mxu0 %v855
    %v983 = vpop.f32.mrf.mxu0
    %v984 = vadd.f32 %v891, %v983
    %v985 = vpop.f32.mrf.mxu0
    %v986 = vpop.f32.mrf.mxu0
    %v987 = vadd.f32 %v891, %v986
    %v988 = vpop.f32.mrf.mxu0
    %989 = vmatprep.mubr.bf16.mxu0 0
    %990 = vmatmul.mubr.bf16.gmra.mxu0 %v856
    %v991 = vpop.f32.mrf.mxu0
    %v992 = vadd.f32 %v891, %v991
    %v993 = vpop.f32.mrf.mxu0
    %v994 = vpop.f32.mrf.mxu0
    %v995 = vadd.f32 %v891, %v994
    %v996 = vpop.f32.mrf.mxu0
    %997 = vmatprep.mubr.bf16.mxu0 0
    %998 = vmatmul.mubr.bf16.gmra.mxu0 %v857
    %v999 = vpop.f32.mrf.mxu0
    %v1000 = vadd.f32 %v891, %v999
    %v1001 = vpop.f32.mrf.mxu0
    %v1002 = vpop.f32.mrf.mxu0
    %v1003 = vadd.f32 %v891, %v1002
    %v1004 = vpop.f32.mrf.mxu0
    %1005 = vmatprep.mubr.bf16.mxu0 0
    %1006 = vmatmul.mubr.bf16.gmra.mxu0 %v858
    %v1007 = vpop.f32.mrf.mxu0
    %v1008 = vadd.f32 %v891, %v1007
    %v1009 = vpop.f32.mrf.mxu0
    %v1010 = vpop.f32.mrf.mxu0
    %v1011 = vadd.f32 %v891, %v1010
    %v1012 = vpop.f32.mrf.mxu0
    %1013 = vmatprep.mubr.bf16.mxu0 0
    %1014 = vmatmul.mubr.bf16.gmra.mxu0 %v859
    %v1015 = vpop.f32.mrf.mxu0
    %v1016 = vadd.f32 %v891, %v1015
    %v1017 = vpop.f32.mrf.mxu0
    %v1018 = vpop.f32.mrf.mxu0
    %v1019 = vadd.f32 %v891, %v1018
    %v1020 = vpop.f32.mrf.mxu0
    %1021 = vmatprep.mubr.bf16.mxu0 0
    %1022 = vmatmul.mubr.bf16.gmra.mxu0 %v860
    %v1023 = vpop.f32.mrf.mxu0
    %v1024 = vadd.f32 %v891, %v1023
    %v1025 = vpop.f32.mrf.mxu0
    %v1026 = vpop.f32.mrf.mxu0
    %v1027 = vadd.f32 %v891, %v1026
    %v1028 = vpop.f32.mrf.mxu0
    %1029 = vmatprep.mubr.bf16.mxu0 0
    %1030 = vmatmul.mubr.bf16.gmra.mxu0 %v861
    %v1031 = vpop.f32.mrf.mxu0
    %v1032 = vadd.f32 %v891, %v1031
    %v1033 = vpop.f32.mrf.mxu0
    %v1034 = vpop.f32.mrf.mxu0
    %v1035 = vadd.f32 %v891, %v1034
    %v1036 = vpop.f32.mrf.mxu0
    %1037 = vmatprep.mubr.bf16.mxu0 0
    %1038 = vmatmul.mubr.bf16.gmra.mxu0 %v862
    %v1039 = vpop.f32.mrf.mxu0
    %v1040 = vadd.f32 %v891, %v1039
    %v1041 = vpop.f32.mrf.mxu0
    %v1042 = vpop.f32.mrf.mxu0
    %v1043 = vadd.f32 %v891, %v1042
    %v1044 = vpop.f32.mrf.mxu0
    %1045 = vmatprep.mubr.bf16.mxu0 0
    %1046 = vmatmul.mubr.bf16.gmra.mxu0 %v863
    %v1047 = vpop.f32.mrf.mxu0
    %v1048 = vadd.f32 %v891, %v1047
    %v1049 = vpop.f32.mrf.mxu0
    %v1050 = vpop.f32.mrf.mxu0
    %v1051 = vadd.f32 %v891, %v1050
    %v1052 = vpop.f32.mrf.mxu0
    %1053 = vmatprep.mubr.bf16.mxu0 0
    %1054 = vmatmul.mubr.bf16.gmra.mxu0 %v864
    %v1055 = vpop.f32.mrf.mxu0
    %v1056 = vadd.f32 %v891, %v1055
    %v1057 = vpop.f32.mrf.mxu0
    %v1058 = vpop.f32.mrf.mxu0
    %v1059 = vadd.f32 %v891, %v1058
    %v1060 = vpop.f32.mrf.mxu0
    %1061 = vmatprep.mubr.bf16.mxu0 0
    %1062 = vmatmul.mubr.bf16.gmra.mxu0 %v865
    %v1063 = vpop.f32.mrf.mxu0
    %v1064 = vadd.f32 %v891, %v1063
    %v1065 = vpop.f32.mrf.mxu0
    %v1066 = vpop.f32.mrf.mxu0
    %v1067 = vadd.f32 %v891, %v1066
    %v1068 = vpop.f32.mrf.mxu0
    %1069 = vmatprep.mubr.bf16.mxu0 0
    %1070 = vmatmul.mubr.bf16.gmra.mxu0 %v866
    %v1071 = vpop.f32.mrf.mxu0
    %v1072 = vadd.f32 %v891, %v1071
    %v1073 = vpop.f32.mrf.mxu0
    %v1074 = vpop.f32.mrf.mxu0
    %v1075 = vadd.f32 %v891, %v1074
    %v1076 = vpop.f32.mrf.mxu0
    %1077 = vmatprep.mubr.bf16.mxu0 0
    %1078 = vmatmul.mubr.bf16.gmra.mxu0 %v867
    %v1079 = vpop.f32.mrf.mxu0
    %v1080 = vadd.f32 %v891, %v1079
    %v1081 = vpop.f32.mrf.mxu0
    %v1082 = vpop.f32.mrf.mxu0
    %v1083 = vadd.f32 %v891, %v1082
    %v1084 = vpop.f32.mrf.mxu0
    %1085 = vmatprep.mubr.bf16.mxu0 0
    %1086 = vmatmul.mubr.bf16.gmra.mxu0 %v868
    %v1087 = vpop.f32.mrf.mxu0
    %v1088 = vadd.f32 %v891, %v1087
    %v1089 = vpop.f32.mrf.mxu0
    %v1090 = vpop.f32.mrf.mxu0
    %v1091 = vadd.f32 %v891, %v1090
    %v1092 = vpop.f32.mrf.mxu0
    %1093 = vmatprep.mubr.bf16.mxu0 0
    %1094 = vmatmul.mubr.bf16.gmra.mxu0 %v869
    %v1095 = vpop.f32.mrf.mxu0
    %v1096 = vadd.f32 %v891, %v1095
    %v1097 = vpop.f32.mrf.mxu0
    %v1098 = vpop.f32.mrf.mxu0
    %v1099 = vadd.f32 %v891, %v1098
    %v1100 = vpop.f32.mrf.mxu0
    %1101 = vdwg.mxu0
    %v1102 = vmax.f32 %v976, 0.0
    %v1103 = vmax.f32 %v979, 0.0
    %v1104 = vmax.f32 %v984, 0.0
    %v1105 = vmax.f32 %v987, 0.0
    %v1106 = vmax.f32 %v992, 0.0
    %v1107 = vmax.f32 %v995, 0.0
    %v1108 = vmax.f32 %v1000, 0.0
    %v1109 = vmax.f32 %v1003, 0.0
    %v1110 = vmax.f32 %v1008, 0.0
    %v1111 = vmax.f32 %v1011, 0.0
    %v1112 = vmax.f32 %v1016, 0.0
    %v1113 = vmax.f32 %v1019, 0.0
    %v1114 = vmax.f32 %v1024, 0.0
    %v1115 = vmax.f32 %v1027, 0.0
    %v1116 = vmax.f32 %v1032, 0.0
    %v1117 = vmax.f32 %v1035, 0.0
    %v1118 = vmax.f32 %v1040, 0.0
    %v1119 = vmax.f32 %v1043, 0.0
    %v1120 = vmax.f32 %v1048, 0.0
    %v1121 = vmax.f32 %v1051, 0.0
    %v1122 = vmax.f32 %v1056, 0.0
    %v1123 = vmax.f32 %v1059, 0.0
    %v1124 = vmax.f32 %v1064, 0.0
    %v1125 = vmax.f32 %v1067, 0.0
    %v1126 = vmax.f32 %v1072, 0.0
    %v1127 = vmax.f32 %v1075, 0.0
    %v1128 = vmax.f32 %v1080, 0.0
    %v1129 = vmax.f32 %v1083, 0.0
    %v1130 = vmax.f32 %v1088, 0.0
    %v1131 = vmax.f32 %v1091, 0.0
    %v1132 = vmax.f32 %v1096, 0.0
    %v1133 = vmax.f32 %v1099, 0.0
    %v1134 = vpack.c.bf16 %v1103, %v1102
    %v1135 = vpack.c.bf16 %v1105, %v1104
    %v1136 = vpack.c.bf16 %v1107, %v1106
    %v1137 = vpack.c.bf16 %v1109, %v1108
    %v1138 = vpack.c.bf16 %v1111, %v1110
    %v1139 = vpack.c.bf16 %v1113, %v1112
    %v1140 = vpack.c.bf16 %v1115, %v1114
    %v1141 = vpack.c.bf16 %v1117, %v1116
    %v1142 = vpack.c.bf16 %v1119, %v1118
    %v1143 = vpack.c.bf16 %v1121, %v1120
    %v1144 = vpack.c.bf16 %v1123, %v1122
    %v1145 = vpack.c.bf16 %v1125, %v1124
    %v1146 = vpack.c.bf16 %v1127, %v1126
    %v1147 = vpack.c.bf16 %v1129, %v1128
    %v1148 = vpack.c.bf16 %v1131, %v1130
    %v1149 = vpack.c.bf16 %v1133, %v1132
    %v1150 = vld [vmem:[%s7] sm:$0xf]
    %v1151 = vld [vmem:[%s7 + $0x4] sm:$0xf]
    %v1152 = vld [vmem:[%s7 + $0x8] sm:$0xf]
    %v1153 = vld [vmem:[%s7 + $0xc] sm:$0xf]
    %v1154 = vld [vmem:[%s7 + $0x10] sm:$0xf]
    %v1155 = vld [vmem:[%s7 + $0x14] sm:$0xf]
    %v1156 = vld [vmem:[%s7 + $0x18] sm:$0xf]
    %v1157 = vld [vmem:[%s7 + $0x1c] sm:$0xf]
    %v1158 = vld [vmem:[%s8] sm:$0x1]
    %v1160 = vlaneseq
    %v1161 = vshrl.u32 %v1160, 7
    %v1162 = vsub.s32 0, %v1161
    %v1163 = vrot.slane %v1158, %v1162
    %v1173 = vunpack.c.l.b16 %v1150
    %v1174 = vunpack.c.l.b16 %v1151
    %v1175 = vunpack.c.l.b16 %v1152
    %v1176 = vunpack.c.l.b16 %v1153
    %v1177 = vunpack.c.l.b16 %v1154
    %v1178 = vunpack.c.l.b16 %v1155
    %v1179 = vunpack.c.l.b16 %v1156
    %v1180 = vunpack.c.l.b16 %v1157
    %v1181 = vpack.c.b16 %v1174, %v1173
    %v1182 = vpack.c.b16 %v1176, %v1175
    %v1183 = vpack.c.b16 %v1178, %v1177
    %v1184 = vpack.c.b16 %v1180, %v1179
    %vm1189 = vcmask 523264
    %v1191 = vsel %vm1189, %v1134, 0
    %v1194 = vsel %vm1189, %v1135, 0
    %v1197 = vsel %vm1189, %v1136, 0
    %v1200 = vsel %vm1189, %v1137, 0
    %v1203 = vsel %vm1189, %v1138, 0
    %v1206 = vsel %vm1189, %v1139, 0
    %v1209 = vsel %vm1189, %v1140, 0
    %v1212 = vsel %vm1189, %v1141, 0
    %v1215 = vsel %vm1189, %v1142, 0
    %v1218 = vsel %vm1189, %v1143, 0
    %v1221 = vsel %vm1189, %v1144, 0
    %v1224 = vsel %vm1189, %v1145, 0
    %v1227 = vsel %vm1189, %v1146, 0
    %v1230 = vsel %vm1189, %v1147, 0
    %v1233 = vsel %vm1189, %v1148, 0
    %v1236 = vsel %vm1189, %v1149, 0
    %1238 = vmatprep.subr.bf16.mxu0 0
    %1239 = vmatpush1.bf16.msra.mxu0 0
    %1240 = vmatprep.subr.bf16.mxu0 0
    %1241 = vmatpush1.bf16.msra.mxu0 0
    %1242 = vmatprep.subr.bf16.mxu0 0
    %1243 = vmatpush1.bf16.msra.mxu0 0
    %1244 = vmatprep.subr.bf16.mxu0 0
    %1245 = vmatpush1.bf16.msra.mxu0 0
    %1246 = vmatprep.subr.bf16.mxu0 0
    %1247 = vmatpush1.bf16.msra.mxu0 %v1184
    %1248 = vmatprep.subr.bf16.mxu0 0
    %1249 = vmatpush1.bf16.msra.mxu0 %v1183
    %1250 = vmatprep.subr.bf16.mxu0 0
    %1251 = vmatpush1.bf16.msra.mxu0 %v1182
    %1252 = vmatprep.subr.bf16.mxu0 0
    %1253 = vmatpush1.bf16.msra.mxu0 %v1181
    %1254 = vmatprep.subr.bf16.mxu0 0
    %1255 = vmatpush2.bf16.msra.mxu0 0
    %1256 = vmatprep.subr.bf16.mxu0 0
    %1257 = vmatpush2.bf16.msra.mxu0 0
    %1258 = vmatprep.subr.bf16.mxu0 0
    %1259 = vmatpush2.bf16.msra.mxu0 0
    %1260 = vmatprep.subr.bf16.mxu0 0
    %1261 = vmatpush2.bf16.msra.mxu0 0
    %1262 = vmatprep.subr.bf16.mxu0 0
    %1263 = vmatpush2.bf16.msra.mxu0 0
    %1264 = vmatprep.subr.bf16.mxu0 0
    %1265 = vmatpush2.bf16.msra.mxu0 0
    %1266 = vmatprep.subr.bf16.mxu0 0
    %1267 = vmatpush2.bf16.msra.mxu0 0
    %1268 = vmatprep.subr.bf16.mxu0 0
    %1269 = vmatpush2.bf16.msra.mxu0 0
    %1270 = vmatprep.mubr.bf16.mxu0 0
    %1271 = vmatmul.mubr.bf16.gmra.mxu0 %v1191
    %v1272 = vpop.f32.mrf.mxu0
    %v1273 = vadd.f32 %v1163, %v1272
    %v1274 = vpop.f32.mrf.mxu0
    %v1275 = vpop.f32.mrf.mxu0
    %v1276 = vadd.f32 %v1163, %v1275
    %v1277 = vpop.f32.mrf.mxu0
    %1278 = vmatprep.mubr.bf16.mxu0 0
    %1279 = vmatmul.mubr.bf16.gmra.mxu0 %v1194
    %v1280 = vpop.f32.mrf.mxu0
    %v1281 = vadd.f32 %v1163, %v1280
    %v1282 = vpop.f32.mrf.mxu0
    %v1283 = vpop.f32.mrf.mxu0
    %v1284 = vadd.f32 %v1163, %v1283
    %v1285 = vpop.f32.mrf.mxu0
    %1286 = vmatprep.mubr.bf16.mxu0 0
    %1287 = vmatmul.mubr.bf16.gmra.mxu0 %v1197
    %v1288 = vpop.f32.mrf.mxu0
    %v1289 = vadd.f32 %v1163, %v1288
    %v1290 = vpop.f32.mrf.mxu0
    %v1291 = vpop.f32.mrf.mxu0
    %v1292 = vadd.f32 %v1163, %v1291
    %v1293 = vpop.f32.mrf.mxu0
    %1294 = vmatprep.mubr.bf16.mxu0 0
    %1295 = vmatmul.mubr.bf16.gmra.mxu0 %v1200
    %v1296 = vpop.f32.mrf.mxu0
    %v1297 = vadd.f32 %v1163, %v1296
    %v1298 = vpop.f32.mrf.mxu0
    %v1299 = vpop.f32.mrf.mxu0
    %v1300 = vadd.f32 %v1163, %v1299
    %v1301 = vpop.f32.mrf.mxu0
    %1302 = vmatprep.mubr.bf16.mxu0 0
    %1303 = vmatmul.mubr.bf16.gmra.mxu0 %v1203
    %v1304 = vpop.f32.mrf.mxu0
    %v1305 = vadd.f32 %v1163, %v1304
    %v1306 = vpop.f32.mrf.mxu0
    %v1307 = vpop.f32.mrf.mxu0
    %v1308 = vadd.f32 %v1163, %v1307
    %v1309 = vpop.f32.mrf.mxu0
    %1310 = vmatprep.mubr.bf16.mxu0 0
    %1311 = vmatmul.mubr.bf16.gmra.mxu0 %v1206
    %v1312 = vpop.f32.mrf.mxu0
    %v1313 = vadd.f32 %v1163, %v1312
    %v1314 = vpop.f32.mrf.mxu0
    %v1315 = vpop.f32.mrf.mxu0
    %v1316 = vadd.f32 %v1163, %v1315
    %v1317 = vpop.f32.mrf.mxu0
    %1318 = vmatprep.mubr.bf16.mxu0 0
    %1319 = vmatmul.mubr.bf16.gmra.mxu0 %v1209
    %v1320 = vpop.f32.mrf.mxu0
    %v1321 = vadd.f32 %v1163, %v1320
    %v1322 = vpop.f32.mrf.mxu0
    %v1323 = vpop.f32.mrf.mxu0
    %v1324 = vadd.f32 %v1163, %v1323
    %v1325 = vpop.f32.mrf.mxu0
    %1326 = vmatprep.mubr.bf16.mxu0 0
    %1327 = vmatmul.mubr.bf16.gmra.mxu0 %v1212
    %v1328 = vpop.f32.mrf.mxu0
    %v1329 = vadd.f32 %v1163, %v1328
    %v1330 = vpop.f32.mrf.mxu0
    %v1331 = vpop.f32.mrf.mxu0
    %v1332 = vadd.f32 %v1163, %v1331
    %v1333 = vpop.f32.mrf.mxu0
    %1334 = vmatprep.mubr.bf16.mxu0 0
    %1335 = vmatmul.mubr.bf16.gmra.mxu0 %v1215
    %v1336 = vpop.f32.mrf.mxu0
    %v1337 = vadd.f32 %v1163, %v1336
    %v1338 = vpop.f32.mrf.mxu0
    %v1339 = vpop.f32.mrf.mxu0
    %v1340 = vadd.f32 %v1163, %v1339
    %v1341 = vpop.f32.mrf.mxu0
    %1342 = vmatprep.mubr.bf16.mxu0 0
    %1343 = vmatmul.mubr.bf16.gmra.mxu0 %v1218
    %v1344 = vpop.f32.mrf.mxu0
    %v1345 = vadd.f32 %v1163, %v1344
    %v1346 = vpop.f32.mrf.mxu0
    %v1347 = vpop.f32.mrf.mxu0
    %v1348 = vadd.f32 %v1163, %v1347
    %v1349 = vpop.f32.mrf.mxu0
    %1350 = vmatprep.mubr.bf16.mxu0 0
    %1351 = vmatmul.mubr.bf16.gmra.mxu0 %v1221
    %v1352 = vpop.f32.mrf.mxu0
    %v1353 = vadd.f32 %v1163, %v1352
    %v1354 = vpop.f32.mrf.mxu0
    %v1355 = vpop.f32.mrf.mxu0
    %v1356 = vadd.f32 %v1163, %v1355
    %v1357 = vpop.f32.mrf.mxu0
    %1358 = vmatprep.mubr.bf16.mxu0 0
    %1359 = vmatmul.mubr.bf16.gmra.mxu0 %v1224
    %v1360 = vpop.f32.mrf.mxu0
    %v1361 = vadd.f32 %v1163, %v1360
    %v1362 = vpop.f32.mrf.mxu0
    %v1363 = vpop.f32.mrf.mxu0
    %v1364 = vadd.f32 %v1163, %v1363
    %v1365 = vpop.f32.mrf.mxu0
    %1366 = vmatprep.mubr.bf16.mxu0 0
    %1367 = vmatmul.mubr.bf16.gmra.mxu0 %v1227
    %v1368 = vpop.f32.mrf.mxu0
    %v1369 = vadd.f32 %v1163, %v1368
    %v1370 = vpop.f32.mrf.mxu0
    %v1371 = vpop.f32.mrf.mxu0
    %v1372 = vadd.f32 %v1163, %v1371
    %v1373 = vpop.f32.mrf.mxu0
    %1374 = vmatprep.mubr.bf16.mxu0 0
    %1375 = vmatmul.mubr.bf16.gmra.mxu0 %v1230
    %v1376 = vpop.f32.mrf.mxu0
    %v1377 = vadd.f32 %v1163, %v1376
    %v1378 = vpop.f32.mrf.mxu0
    %v1379 = vpop.f32.mrf.mxu0
    %v1380 = vadd.f32 %v1163, %v1379
    %v1381 = vpop.f32.mrf.mxu0
    %1382 = vmatprep.mubr.bf16.mxu0 0
    %1383 = vmatmul.mubr.bf16.gmra.mxu0 %v1233
    %v1384 = vpop.f32.mrf.mxu0
    %v1385 = vadd.f32 %v1163, %v1384
    %v1386 = vpop.f32.mrf.mxu0
    %v1387 = vpop.f32.mrf.mxu0
    %v1388 = vadd.f32 %v1163, %v1387
    %v1389 = vpop.f32.mrf.mxu0
    %1390 = vmatprep.mubr.bf16.mxu0 0
    %1391 = vmatmul.mubr.bf16.gmra.mxu0 %v1236
    %v1392 = vpop.f32.mrf.mxu0
    %v1393 = vadd.f32 %v1163, %v1392
    %v1394 = vpop.f32.mrf.mxu0
    %v1395 = vpop.f32.mrf.mxu0
    %v1396 = vadd.f32 %v1163, %v1395
    %v1397 = vpop.f32.mrf.mxu0
    %1398 = vdwg.mxu0
    %v1399 = vmax.f32 %v1273, 0.0
    %v1400 = vmax.f32 %v1276, 0.0
    %v1401 = vmax.f32 %v1281, 0.0
    %v1402 = vmax.f32 %v1284, 0.0
    %v1403 = vmax.f32 %v1289, 0.0
    %v1404 = vmax.f32 %v1292, 0.0
    %v1405 = vmax.f32 %v1297, 0.0
    %v1406 = vmax.f32 %v1300, 0.0
    %v1407 = vmax.f32 %v1305, 0.0
    %v1408 = vmax.f32 %v1308, 0.0
    %v1409 = vmax.f32 %v1313, 0.0
    %v1410 = vmax.f32 %v1316, 0.0
    %v1411 = vmax.f32 %v1321, 0.0
    %v1412 = vmax.f32 %v1324, 0.0
    %v1413 = vmax.f32 %v1329, 0.0
    %v1414 = vmax.f32 %v1332, 0.0
    %v1415 = vmax.f32 %v1337, 0.0
    %v1416 = vmax.f32 %v1340, 0.0
    %v1417 = vmax.f32 %v1345, 0.0
    %v1418 = vmax.f32 %v1348, 0.0
    %v1419 = vmax.f32 %v1353, 0.0
    %v1420 = vmax.f32 %v1356, 0.0
    %v1421 = vmax.f32 %v1361, 0.0
    %v1422 = vmax.f32 %v1364, 0.0
    %v1423 = vmax.f32 %v1369, 0.0
    %v1424 = vmax.f32 %v1372, 0.0
    %v1425 = vmax.f32 %v1377, 0.0
    %v1426 = vmax.f32 %v1380, 0.0
    %v1427 = vmax.f32 %v1385, 0.0
    %v1428 = vmax.f32 %v1388, 0.0
    %v1429 = vmax.f32 %v1393, 0.0
    %v1430 = vmax.f32 %v1396, 0.0
    %v1431 = vpack.c.bf16 %v1400, %v1399
    %v1432 = vpack.c.bf16 %v1402, %v1401
    %v1433 = vpack.c.bf16 %v1404, %v1403
    %v1434 = vpack.c.bf16 %v1406, %v1405
    %v1435 = vpack.c.bf16 %v1408, %v1407
    %v1436 = vpack.c.bf16 %v1410, %v1409
    %v1437 = vpack.c.bf16 %v1412, %v1411
    %v1438 = vpack.c.bf16 %v1414, %v1413
    %v1439 = vpack.c.bf16 %v1416, %v1415
    %v1440 = vpack.c.bf16 %v1418, %v1417
    %v1441 = vpack.c.bf16 %v1420, %v1419
    %v1442 = vpack.c.bf16 %v1422, %v1421
    %v1443 = vpack.c.bf16 %v1424, %v1423
    %v1444 = vpack.c.bf16 %v1426, %v1425
    %v1445 = vpack.c.bf16 %v1428, %v1427
    %v1446 = vpack.c.bf16 %v1430, %v1429
    %v1447 = vld [vmem:[%s9] sm:$0xf]
    %v1448 = vld [vmem:[%s9 + $0x4] sm:$0xf]
    %v1449 = vld [vmem:[%s9 + $0x8] sm:$0xf]
    %v1450 = vld [vmem:[%s9 + $0xc] sm:$0xf]
    %v1451 = vld [vmem:[%s10] sm:$0x1]
    %v1453 = vlaneseq
    %v1454 = vshrl.u32 %v1453, 7
    %v1455 = vsub.s32 0, %v1454
    %v1456 = vrot.slane %v1451, %v1455
    %v1462 = vunpack.c.l.b16 %v1447
    %v1463 = vunpack.c.l.b16 %v1448
    %v1464 = vunpack.c.l.b16 %v1449
    %v1465 = vunpack.c.l.b16 %v1450
    %v1466 = vpack.c.b16 %v1463, %v1462
    %v1467 = vpack.c.b16 %v1465, %v1464
    %v1471 = vsel %vm188, %v1431, 0
    %v1474 = vsel %vm188, %v1432, 0
    %v1477 = vsel %vm188, %v1433, 0
    %v1480 = vsel %vm188, %v1434, 0
    %v1483 = vsel %vm188, %v1435, 0
    %v1486 = vsel %vm188, %v1436, 0
    %v1489 = vsel %vm188, %v1437, 0
    %v1492 = vsel %vm188, %v1438, 0
    %v1495 = vsel %vm188, %v1439, 0
    %v1498 = vsel %vm188, %v1440, 0
    %v1501 = vsel %vm188, %v1441, 0
    %v1504 = vsel %vm188, %v1442, 0
    %v1507 = vsel %vm188, %v1443, 0
    %v1510 = vsel %vm188, %v1444, 0
    %v1513 = vsel %vm188, %v1445, 0
    %v1516 = vsel %vm188, %v1446, 0
    %1518 = vmatprep.subr.bf16.mxu0 0
    %1519 = vmatpush1.bf16.msra.mxu0 0
    %1520 = vmatprep.subr.bf16.mxu0 0
    %1521 = vmatpush1.bf16.msra.mxu0 0
    %1522 = vmatprep.subr.bf16.mxu0 0
    %1523 = vmatpush1.bf16.msra.mxu0 0
    %1524 = vmatprep.subr.bf16.mxu0 0
    %1525 = vmatpush1.bf16.msra.mxu0 0
    %1526 = vmatprep.subr.bf16.mxu0 0
    %1527 = vmatpush1.bf16.msra.mxu0 0
    %1528 = vmatprep.subr.bf16.mxu0 0
    %1529 = vmatpush1.bf16.msra.mxu0 0
    %1530 = vmatprep.subr.bf16.mxu0 0
    %1531 = vmatpush1.bf16.msra.mxu0 %v1467
    %1532 = vmatprep.subr.bf16.mxu0 0
    %1533 = vmatpush1.bf16.msra.mxu0 %v1466
    %1534 = vmatprep.subr.bf16.mxu0 0
    %1535 = vmatpush2.bf16.msra.mxu0 0
    %1536 = vmatprep.subr.bf16.mxu0 0
    %1537 = vmatpush2.bf16.msra.mxu0 0
    %1538 = vmatprep.subr.bf16.mxu0 0
    %1539 = vmatpush2.bf16.msra.mxu0 0
    %1540 = vmatprep.subr.bf16.mxu0 0
    %1541 = vmatpush2.bf16.msra.mxu0 0
    %1542 = vmatprep.subr.bf16.mxu0 0
    %1543 = vmatpush2.bf16.msra.mxu0 0
    %1544 = vmatprep.subr.bf16.mxu0 0
    %1545 = vmatpush2.bf16.msra.mxu0 0
    %1546 = vmatprep.subr.bf16.mxu0 0
    %1547 = vmatpush2.bf16.msra.mxu0 0
    %1548 = vmatprep.subr.bf16.mxu0 0
    %1549 = vmatpush2.bf16.msra.mxu0 0
    %1550 = vmatprep.mubr.bf16.mxu0 0
    %1551 = vmatmul.mubr.bf16.gmra.mxu0 %v1471
    %v1552 = vpop.f32.mrf.mxu0
    %v1553 = vadd.f32 %v1456, %v1552
    %v1554 = vpop.f32.mrf.mxu0
    %v1555 = vpop.f32.mrf.mxu0
    %v1556 = vadd.f32 %v1456, %v1555
    %v1557 = vpop.f32.mrf.mxu0
    %1558 = vmatprep.mubr.bf16.mxu0 0
    %1559 = vmatmul.mubr.bf16.gmra.mxu0 %v1474
    %v1560 = vpop.f32.mrf.mxu0
    %v1561 = vadd.f32 %v1456, %v1560
    %v1562 = vpop.f32.mrf.mxu0
    %v1563 = vpop.f32.mrf.mxu0
    %v1564 = vadd.f32 %v1456, %v1563
    %v1565 = vpop.f32.mrf.mxu0
    %1566 = vmatprep.mubr.bf16.mxu0 0
    %1567 = vmatmul.mubr.bf16.gmra.mxu0 %v1477
    %v1568 = vpop.f32.mrf.mxu0
    %v1569 = vadd.f32 %v1456, %v1568
    %v1570 = vpop.f32.mrf.mxu0
    %v1571 = vpop.f32.mrf.mxu0
    %v1572 = vadd.f32 %v1456, %v1571
    %v1573 = vpop.f32.mrf.mxu0
    %1574 = vmatprep.mubr.bf16.mxu0 0
    %1575 = vmatmul.mubr.bf16.gmra.mxu0 %v1480
    %v1576 = vpop.f32.mrf.mxu0
    %v1577 = vadd.f32 %v1456, %v1576
    %v1578 = vpop.f32.mrf.mxu0
    %v1579 = vpop.f32.mrf.mxu0
    %v1580 = vadd.f32 %v1456, %v1579
    %v1581 = vpop.f32.mrf.mxu0
    %1582 = vmatprep.mubr.bf16.mxu0 0
    %1583 = vmatmul.mubr.bf16.gmra.mxu0 %v1483
    %v1584 = vpop.f32.mrf.mxu0
    %v1585 = vadd.f32 %v1456, %v1584
    %v1586 = vpop.f32.mrf.mxu0
    %v1587 = vpop.f32.mrf.mxu0
    %v1588 = vadd.f32 %v1456, %v1587
    %v1589 = vpop.f32.mrf.mxu0
    %1590 = vmatprep.mubr.bf16.mxu0 0
    %1591 = vmatmul.mubr.bf16.gmra.mxu0 %v1486
    %v1592 = vpop.f32.mrf.mxu0
    %v1593 = vadd.f32 %v1456, %v1592
    %v1594 = vpop.f32.mrf.mxu0
    %v1595 = vpop.f32.mrf.mxu0
    %v1596 = vadd.f32 %v1456, %v1595
    %v1597 = vpop.f32.mrf.mxu0
    %1598 = vmatprep.mubr.bf16.mxu0 0
    %1599 = vmatmul.mubr.bf16.gmra.mxu0 %v1489
    %v1600 = vpop.f32.mrf.mxu0
    %v1601 = vadd.f32 %v1456, %v1600
    %v1602 = vpop.f32.mrf.mxu0
    %v1603 = vpop.f32.mrf.mxu0
    %v1604 = vadd.f32 %v1456, %v1603
    %v1605 = vpop.f32.mrf.mxu0
    %1606 = vmatprep.mubr.bf16.mxu0 0
    %1607 = vmatmul.mubr.bf16.gmra.mxu0 %v1492
    %v1608 = vpop.f32.mrf.mxu0
    %v1609 = vadd.f32 %v1456, %v1608
    %v1610 = vpop.f32.mrf.mxu0
    %v1611 = vpop.f32.mrf.mxu0
    %v1612 = vadd.f32 %v1456, %v1611
    %v1613 = vpop.f32.mrf.mxu0
    %1614 = vmatprep.mubr.bf16.mxu0 0
    %1615 = vmatmul.mubr.bf16.gmra.mxu0 %v1495
    %v1616 = vpop.f32.mrf.mxu0
    %v1617 = vadd.f32 %v1456, %v1616
    %v1618 = vpop.f32.mrf.mxu0
    %v1619 = vpop.f32.mrf.mxu0
    %v1620 = vadd.f32 %v1456, %v1619
    %v1621 = vpop.f32.mrf.mxu0
    %1622 = vmatprep.mubr.bf16.mxu0 0
    %1623 = vmatmul.mubr.bf16.gmra.mxu0 %v1498
    %v1624 = vpop.f32.mrf.mxu0
    %v1625 = vadd.f32 %v1456, %v1624
    %v1626 = vpop.f32.mrf.mxu0
    %v1627 = vpop.f32.mrf.mxu0
    %v1628 = vadd.f32 %v1456, %v1627
    %v1629 = vpop.f32.mrf.mxu0
    %1630 = vmatprep.mubr.bf16.mxu0 0
    %1631 = vmatmul.mubr.bf16.gmra.mxu0 %v1501
    %v1632 = vpop.f32.mrf.mxu0
    %v1633 = vadd.f32 %v1456, %v1632
    %v1634 = vpop.f32.mrf.mxu0
    %v1635 = vpop.f32.mrf.mxu0
    %v1636 = vadd.f32 %v1456, %v1635
    %v1637 = vpop.f32.mrf.mxu0
    %1638 = vmatprep.mubr.bf16.mxu0 0
    %1639 = vmatmul.mubr.bf16.gmra.mxu0 %v1504
    %v1640 = vpop.f32.mrf.mxu0
    %v1641 = vadd.f32 %v1456, %v1640
    %v1642 = vpop.f32.mrf.mxu0
    %v1643 = vpop.f32.mrf.mxu0
    %v1644 = vadd.f32 %v1456, %v1643
    %v1645 = vpop.f32.mrf.mxu0
    %1646 = vmatprep.mubr.bf16.mxu0 0
    %1647 = vmatmul.mubr.bf16.gmra.mxu0 %v1507
    %v1648 = vpop.f32.mrf.mxu0
    %v1649 = vadd.f32 %v1456, %v1648
    %v1650 = vpop.f32.mrf.mxu0
    %v1651 = vpop.f32.mrf.mxu0
    %v1652 = vadd.f32 %v1456, %v1651
    %v1653 = vpop.f32.mrf.mxu0
    %1654 = vmatprep.mubr.bf16.mxu0 0
    %1655 = vmatmul.mubr.bf16.gmra.mxu0 %v1510
    %v1656 = vpop.f32.mrf.mxu0
    %v1657 = vadd.f32 %v1456, %v1656
    %v1658 = vpop.f32.mrf.mxu0
    %v1659 = vpop.f32.mrf.mxu0
    %v1660 = vadd.f32 %v1456, %v1659
    %v1661 = vpop.f32.mrf.mxu0
    %1662 = vmatprep.mubr.bf16.mxu0 0
    %1663 = vmatmul.mubr.bf16.gmra.mxu0 %v1513
    %v1664 = vpop.f32.mrf.mxu0
    %v1665 = vadd.f32 %v1456, %v1664
    %v1666 = vpop.f32.mrf.mxu0
    %v1667 = vpop.f32.mrf.mxu0
    %v1668 = vadd.f32 %v1456, %v1667
    %v1669 = vpop.f32.mrf.mxu0
    %1670 = vmatprep.mubr.bf16.mxu0 0
    %1671 = vmatmul.mubr.bf16.gmra.mxu0 %v1516
    %v1672 = vpop.f32.mrf.mxu0
    %v1673 = vadd.f32 %v1456, %v1672
    %v1674 = vpop.f32.mrf.mxu0
    %v1675 = vpop.f32.mrf.mxu0
    %v1676 = vadd.f32 %v1456, %v1675
    %v1677 = vpop.f32.mrf.mxu0
    %1678 = vdwg.mxu0
    %v1679 = vpack.c.bf16 %v1556, %v1553
    %v1680 = vpack.c.bf16 %v1564, %v1561
    %v1681 = vpack.c.bf16 %v1572, %v1569
    %v1682 = vpack.c.bf16 %v1580, %v1577
    %v1683 = vpack.c.bf16 %v1588, %v1585
    %v1684 = vpack.c.bf16 %v1596, %v1593
    %v1685 = vpack.c.bf16 %v1604, %v1601
    %v1686 = vpack.c.bf16 %v1612, %v1609
    %v1687 = vpack.c.bf16 %v1620, %v1617
    %v1688 = vpack.c.bf16 %v1628, %v1625
    %v1689 = vpack.c.bf16 %v1636, %v1633
    %v1690 = vpack.c.bf16 %v1644, %v1641
    %v1691 = vpack.c.bf16 %v1652, %v1649
    %v1692 = vpack.c.bf16 %v1660, %v1657
    %v1693 = vpack.c.bf16 %v1668, %v1665
    %v1694 = vpack.c.bf16 %v1676, %v1673
    %v1711 = vunpack.c.l.b16 %v1679
    %v1712 = vunpack.c.h.b16 %v1679
    %v1713 = vunpack.c.l.b16 %v1680
    %v1714 = vunpack.c.h.b16 %v1680
    %v1715 = vunpack.c.l.b16 %v1681
    %v1716 = vunpack.c.h.b16 %v1681
    %v1717 = vunpack.c.l.b16 %v1682
    %v1718 = vunpack.c.h.b16 %v1682
    %v1719 = vunpack.c.l.b16 %v1683
    %v1720 = vunpack.c.h.b16 %v1683
    %v1721 = vunpack.c.l.b16 %v1684
    %v1722 = vunpack.c.h.b16 %v1684
    %v1723 = vunpack.c.l.b16 %v1685
    %v1724 = vunpack.c.h.b16 %v1685
    %v1725 = vunpack.c.l.b16 %v1686
    %v1726 = vunpack.c.h.b16 %v1686
    %v1727 = vunpack.c.l.b16 %v1687
    %v1728 = vunpack.c.h.b16 %v1687
    %v1729 = vunpack.c.l.b16 %v1688
    %v1730 = vunpack.c.h.b16 %v1688
    %v1731 = vunpack.c.l.b16 %v1689
    %v1732 = vunpack.c.h.b16 %v1689
    %v1733 = vunpack.c.l.b16 %v1690
    %v1734 = vunpack.c.h.b16 %v1690
    %v1735 = vunpack.c.l.b16 %v1691
    %v1736 = vunpack.c.h.b16 %v1691
    %v1737 = vunpack.c.l.b16 %v1692
    %v1738 = vunpack.c.h.b16 %v1692
    %v1739 = vunpack.c.l.b16 %v1693
    %v1740 = vunpack.c.h.b16 %v1693
    %v1741 = vunpack.c.l.b16 %v1694
    %v1742 = vunpack.c.h.b16 %v1694
    %v1743 = vpack.c.b16 %v1711, %v1711
    %v1744 = vpack.c.b16 %v1712, %v1712
    %v1745 = vpack.c.b16 %v1713, %v1713
    %v1746 = vpack.c.b16 %v1714, %v1714
    %v1747 = vpack.c.b16 %v1715, %v1715
    %v1748 = vpack.c.b16 %v1716, %v1716
    %v1749 = vpack.c.b16 %v1717, %v1717
    %v1750 = vpack.c.b16 %v1718, %v1718
    %v1751 = vpack.c.b16 %v1719, %v1719
    %v1752 = vpack.c.b16 %v1720, %v1720
    %v1753 = vpack.c.b16 %v1721, %v1721
    %v1754 = vpack.c.b16 %v1722, %v1722
    %v1755 = vpack.c.b16 %v1723, %v1723
    %v1756 = vpack.c.b16 %v1724, %v1724
    %v1757 = vpack.c.b16 %v1725, %v1725
    %v1758 = vpack.c.b16 %v1726, %v1726
    %v1759 = vpack.c.b16 %v1727, %v1727
    %v1760 = vpack.c.b16 %v1728, %v1728
    %v1761 = vpack.c.b16 %v1729, %v1729
    %v1762 = vpack.c.b16 %v1730, %v1730
    %v1763 = vpack.c.b16 %v1731, %v1731
    %v1764 = vpack.c.b16 %v1732, %v1732
    %v1765 = vpack.c.b16 %v1733, %v1733
    %v1766 = vpack.c.b16 %v1734, %v1734
    %v1767 = vpack.c.b16 %v1735, %v1735
    %v1768 = vpack.c.b16 %v1736, %v1736
    %v1769 = vpack.c.b16 %v1737, %v1737
    %v1770 = vpack.c.b16 %v1738, %v1738
    %v1771 = vpack.c.b16 %v1739, %v1739
    %v1772 = vpack.c.b16 %v1740, %v1740
    %v1773 = vpack.c.b16 %v1741, %v1741
    %v1774 = vpack.c.b16 %v1742, %v1742
    %1807 = vst [vmem:[#allocation2] sm:$0xf] %v1743
    %1808 = vst [vmem:[#allocation2 + $0x4] sm:$0xf] %v1744
    %1809 = vst [vmem:[#allocation2 + $0x8] sm:$0xf] %v1745
    %1810 = vst [vmem:[#allocation2 + $0xc] sm:$0xf] %v1746
    %1811 = vst [vmem:[#allocation2 + $0x10] sm:$0xf] %v1747
    %1812 = vst [vmem:[#allocation2 + $0x14] sm:$0xf] %v1748
    %1813 = vst [vmem:[#allocation2 + $0x18] sm:$0xf] %v1749
    %1814 = vst [vmem:[#allocation2 + $0x1c] sm:$0xf] %v1750
    %1815 = vst [vmem:[#allocation2 + $0x20] sm:$0xf] %v1751
    %1816 = vst [vmem:[#allocation2 + $0x24] sm:$0xf] %v1752
    %1817 = vst [vmem:[#allocation2 + $0x28] sm:$0xf] %v1753
    %1818 = vst [vmem:[#allocation2 + $0x2c] sm:$0xf] %v1754
    %1819 = vst [vmem:[#allocation2 + $0x30] sm:$0xf] %v1755
    %1820 = vst [vmem:[#allocation2 + $0x34] sm:$0xf] %v1756
    %1821 = vst [vmem:[#allocation2 + $0x38] sm:$0xf] %v1757
    %1822 = vst [vmem:[#allocation2 + $0x3c] sm:$0xf] %v1758
    %1823 = vst [vmem:[#allocation2 + $0x40] sm:$0xf] %v1759
    %1824 = vst [vmem:[#allocation2 + $0x44] sm:$0xf] %v1760
    %1825 = vst [vmem:[#allocation2 + $0x48] sm:$0xf] %v1761
    %1826 = vst [vmem:[#allocation2 + $0x4c] sm:$0xf] %v1762
    %1827 = vst [vmem:[#allocation2 + $0x50] sm:$0xf] %v1763
    %1828 = vst [vmem:[#allocation2 + $0x54] sm:$0xf] %v1764
    %1829 = vst [vmem:[#allocation2 + $0x58] sm:$0xf] %v1765
    %1830 = vst [vmem:[#allocation2 + $0x5c] sm:$0xf] %v1766
    %1831 = vst [vmem:[#allocation2 + $0x60] sm:$0xf] %v1767
    %1832 = vst [vmem:[#allocation2 + $0x64] sm:$0xf] %v1768
    %1833 = vst [vmem:[#allocation2 + $0x68] sm:$0xf] %v1769
    %1834 = vst [vmem:[#allocation2 + $0x6c] sm:$0xf] %v1770
    %1835 = vst [vmem:[#allocation2 + $0x70] sm:$0xf] %v1771
    %1836 = vst [vmem:[#allocation2 + $0x74] sm:$0xf] %v1772
    %1837 = vst [vmem:[#allocation2 + $0x78] sm:$0xf] %v1773
    %1838 = vst [vmem:[#allocation2 + $0x7c] sm:$0xf] %v1774
    // Predicated region
    $region46: #{dnn_forward.1} parent=1 // pred_check
      _
    $region47: #{dnn_forward.1} parent=1 // pred_check_branch
      %1840 = sbr.rel (0) target = $region49
    $region48: #{dnn_forward.1} parent=1 // pred_region
      %s1842 = ssub.s32 2048, 2048
      %1843 = vsyncadd [#allocation3], %s1842
      %s1844 = sshll.u32 [#allocation2], 4
      %s1845 = int_to_ptr.vmem [resolvable:$true] %s1844
      %1850 = dma.vmem_to_hbm [thread:$0]  %s1845, 2048, %s11, [#allocation3], 64, 64, 4
    $region49: #{dnn_forward.1} parent=1 // pred_fallthru
      _
    // Predicated region
    $region50: #{dnn_forward.1} parent=1 // pred_check
      _
    $region51: #{dnn_forward.1} parent=1 // pred_check_branch
      %1852 = sbr.rel (0) target = $region53
    $region52: #{dnn_forward.1} parent=1 // pred_region
      %1853 = dma.done [#allocation3], 2048
    $region53: #{dnn_forward.1} parent=1 // pred_fallthru
      _
    %1854 = vsyncpa [#allocation3], 1

</llo_original>
